<compile_context>
chip_gen: v6e
topology: v6e:2x2x1
jax: 0.10.0
libtpu: 0.0.40
codegen_flags: <defaults>
</compile_context>

<pallas_src>
import jax
import jax.numpy as jnp
from jax.experimental import pallas as pl
from jax.experimental.pallas import tpu as pltpu


# ---------------------------------------------------------------------------
# Wrapper-side glue: fold stride-2/pad-1 column gather + conv weights into one
# (4*Cin_cols, Wout*Cout) matrix (the four kh taps stacked along K).
# ---------------------------------------------------------------------------
def _build_gcat(w, win, wout, cpad):
    _, _, cin, cout = w.shape
    iw = jnp.arange(win)[None, :]                       # (1, win)
    wo = jnp.arange(wout)[:, None]                      # (wout, 1)
    kw = iw - 2 * wo + 1                                # (wout, win)
    valid = ((kw >= 0) & (kw < 4)).astype(w.dtype)
    kw_c = jnp.clip(kw, 0, 3)
    blocks = []
    for kh in range(4):
        wsel = w[kh][kw_c] * valid[..., None, None]     # (wout, win, cin, cout)
        g = jnp.transpose(wsel, (1, 2, 0, 3)).reshape(win * cin, wout * cout)
        if cpad > win * cin:                            # pad K rows to the padded col count
            g = jnp.pad(g, ((0, cpad - win * cin), (0, 0)))
        blocks.append(g)
    return jnp.concatenate(blocks, axis=0).astype(jnp.bfloat16)   # (4*cpad, wout*cout)


# ---------------------------------------------------------------------------
# Fused forward: one grid step == TB images.
# ---------------------------------------------------------------------------
def cross_evaluator_forward(params, img_nchw, batch_tile=64):
    B, cin0, H, W = img_nchw.shape
    assert H == W and H >= 16 and (H & (H - 1)) == 0, "img_size: power of two >= 16"

    TB = min(batch_tile, B)
    n_blocks = -(-B // TB)
    Bp = n_blocks * TB

    # NCHW -> NHWC -> lane-dense (H, W*C) rows; pad cols to a multiple of 128
    # and batch to a multiple of TB; stack images along sublanes: (Bp*H, c0p).
    x = jnp.transpose(img_nchw, (0, 2, 3, 1)).astype(jnp.float32).reshape(B, H, W * cin0)
    c0 = W * cin0
    c0p = -(-c0 // 128) * 128
    if c0p != c0:
        x = jnp.pad(x, ((0, 0), (0, 0), (0, c0p - c0)))
    if Bp != B:
        x = jnp.pad(x, ((0, Bp - B), (0, 0), (0, 0)))
    x2d = x.reshape(Bp * H, c0p)

    # Folded per-layer operands.
    layer_dims, g_mats, b_rows = [], [], []
    hin, win, cpad = H, W, c0p
    flops = 0
    for (w, b) in params["convs"]:
        cout = w.shape[-1]
        hout, wout = hin // 2, win // 2
        g_mats.append(_build_gcat(w, win, wout, cpad))
        b_rows.append(jnp.tile(b, wout)[None, :].astype(jnp.float32))   # (1, wout*cout)
        layer_dims.append((hin, hout, cpad, wout * cout))
        flops += 2 * (TB * hout) * (4 * cpad) * (wout * cout)
        hin, win, cpad = hout, wout, wout * cout        # next-layer cols = wout*cout (mult of 128)

    h4, w4, cols4 = hin, win, cpad                      # final feature map (h4, w4*128)
    w1, b1 = params["fc1"]
    w2, b2 = params["fc2"]
    # AdaptiveAvgPool2d(1) W-average folded into fc1 (tiled + pre-scaled).
    w1_eff = (jnp.tile(w1, (w4, 1)) / float(h4 * w4)).astype(jnp.bfloat16)
    b1_row = b1.reshape(1, -1).astype(jnp.float32)
    w2_row = w2.reshape(1, -1).astype(jnp.float32)      # (1, 64) for the VPU fc2
    b2_sc = b2.reshape(1, 1).astype(jnp.float32)
    flops = (flops + 2 * TB * cols4 * 64 + 2 * TB * 64) * n_blocks

    OFF = 16                                            # tile-aligned staging offset
    scr_rows = TB * H + 32
    scr_cols = max(c0p, cols4)

    def kernel(x_ref, g1, c1, g2, c2, g3, c3, g4, c4,
               w1_ref, b1_ref, w2_ref, b2_ref, o_ref, scr):
        g_refs = (g1, g2, g3, g4)
        c_refs = (c1, c2, c3, c4)
        act = x_ref[...]                                # (TB*H, c0p) f32
        for li, (lhin, lhout, ccin, ccout) in enumerate(layer_dims):
            n_in, n_out = TB * lhin, TB * lhout
            # Stage the activation so the four kh taps come back as stride-2
            # row gathers from VMEM (replaces the tiny R matmuls).
            scr[pl.ds(OFF, n_in), 0:ccin] = act
            taps = [scr[pl.ds(OFF - 1 + kh, n_out, stride=2), 0:ccin]
                    for kh in range(4)]
            # Zero the kh=0 / kh=3 taps on rows whose tap falls in the conv
            # zero-padding (or in the neighbouring image of the batch stack).
            o_idx = jax.lax.broadcasted_iota(jnp.int32, (n_out, ccin), 0) & (lhout - 1)
            taps[0] = jnp.where(o_idx != 0, taps[0], 0.0)
            taps[3] = jnp.where(o_idx != lhout - 1, taps[3], 0.0)
            rows_cat = jnp.concatenate(taps, axis=1).astype(jnp.bfloat16)  # (n_out, 4*ccin)
            y = jnp.dot(rows_cat, g_refs[li][...],
                        preferred_element_type=jnp.float32) + c_refs[li][...]
            act = jnp.where(y >= 0.0, y, 0.2 * y)       # LeakyReLU(0.2), f32

        # AdaptiveAvgPool2d(1): W-average folded into w1_eff; per-image H-sum
        # is a strided-phase sum (identity when h4 == 1, e.g. img_size 16).
        if h4 == 1:
            pooled = act                                # (TB, cols4)
        else:
            scr[pl.ds(0, TB * h4), 0:cols4] = act
            pooled = scr[pl.ds(0, TB, stride=h4), 0:cols4]
            for r in range(1, h4):
                pooled = pooled + scr[pl.ds(r, TB, stride=h4), 0:cols4]

        hdn = jnp.dot(pooled.astype(jnp.bfloat16), w1_ref[...],
                      preferred_element_type=jnp.float32) + b1_ref[...]
        hdn = jnp.maximum(hdn, 0.0)                     # ReLU
        # fc2 (64 -> 1) as VPU multiply + lane reduce (no N=1 MXU matmul).
        z = jnp.sum(hdn * w2_ref[...], axis=1, keepdims=True) + b2_ref[...]
        o_ref[...] = 1.0 / (1.0 + jnp.exp(-z))          # exact sigmoid, f32

    def const_spec(a):
        return pl.BlockSpec(a.shape, lambda i: (0, 0))

    operands = [x2d]
    in_specs = [pl.BlockSpec((TB * H, c0p), lambda i: (i, 0))]
    for g, c in zip(g_mats, b_rows):
        operands += [g, c]
        in_specs += [const_spec(g), const_spec(c)]
    operands += [w1_eff, b1_row, w2_row, b2_sc]
    in_specs += [const_spec(w1_eff), const_spec(b1_row),
                 const_spec(w2_row), const_spec(b2_sc)]

    bytes_accessed = sum(int(a.size) * a.dtype.itemsize for a in operands) + Bp * 4

    out = pl.pallas_call(
        kernel,
        out_shape=jax.ShapeDtypeStruct((Bp, 1), jnp.float32),
        grid=(n_blocks,),
        in_specs=in_specs,
        out_specs=pl.BlockSpec((TB, 1), lambda i: (i, 0)),
        scratch_shapes=[pltpu.VMEM((scr_rows, scr_cols), jnp.float32)],
        compiler_params=pltpu.CompilerParams(
            dimension_semantics=("parallel",),
            vmem_limit_bytes=32 * 1024 * 1024),
        cost_estimate=pl.CostEstimate(
            flops=int(flops), transcendentals=int(Bp),
            bytes_accessed=int(bytes_accessed)),
    )(*operands)
    return jnp.squeeze(out[:B])                         # matches torch .squeeze()


# ---------------------------------------------------------------------------
# Parameters (deterministic synthetic init; shapes from CrossEvaluator.__init__)
# Conv weights stored as (kh, kw, cin, cout) == torch_weight.permute(2, 3, 1, 0).
# ---------------------------------------------------------------------------
def init_params(key):
    conv_cfg = [(3, 16), (16, 32), (32, 64), (64, 128)]
    keys = jax.random.split(key, len(conv_cfg) + 2)
    params = {"convs": []}
    for (cin, cout), k in zip(conv_cfg, keys[:4]):
        kw_, kb_ = jax.random.split(k)
        w = jax.random.normal(kw_, (4, 4, cin, cout), jnp.float32) * 0.05
        b = jax.random.normal(kb_, (cout,), jnp.float32) * 0.01
        params["convs"].append((w, b))
    k1a, k1b = jax.random.split(keys[4])
    params["fc1"] = (jax.random.normal(k1a, (128, 64), jnp.float32) * 0.05,
                     jax.random.normal(k1b, (64,), jnp.float32) * 0.01)
    k2a, k2b = jax.random.split(keys[5])
    params["fc2"] = (jax.random.normal(k2a, (64, 1), jnp.float32) * 0.05,
                     jax.random.normal(k2b, (1,), jnp.float32) * 0.01)
    return params


# Pure-JAX reference (correctness check only; not part of the kernel path).
def _reference_forward(params, img_nchw):
    x = jnp.transpose(img_nchw, (0, 2, 3, 1)).astype(jnp.float32)
    for (w, b) in params["convs"]:
        x = jax.lax.conv_general_dilated(
            x, w, window_strides=(2, 2), padding=((1, 1), (1, 1)),
            dimension_numbers=("NHWC", "HWIO", "NHWC")) + b
        x = jnp.where(x >= 0.0, x, 0.2 * x)
    pooled = jnp.mean(x, axis=(1, 2))
    w1, b1 = params["fc1"]
    w2, b2 = params["fc2"]
    h = jnp.maximum(pooled @ w1 + b1, 0.0)
    return jnp.squeeze(jax.nn.sigmoid(h @ w2 + b2))


if __name__ == "__main__":
    key = jax.random.PRNGKey(0)
    k_in, k_par = jax.random.split(key)
    # batch=2, channels=3 (Conv2d(3,16,...) requires RGB), img_size=16
    img = jax.random.normal(k_in, (2, 3, 16, 16), jnp.float32)
    params = init_params(k_par)

    fwd = jax.jit(cross_evaluator_forward)
    out = jax.block_until_ready(fwd(params, img))

    assert out.shape == (2,), out.shape
    assert bool(jnp.all((out > 0.0) & (out < 1.0))), out

    ref = _reference_forward(params, img)
    assert bool(jnp.all(jnp.abs(out - ref) < 5e-2)), (out, ref)
    print("KERNEL_OK")
</pallas_src>

<mosaic_0001>
module attributes {stable_mosaic.version = 11 : i64} {
  func.func @kernel(%arg0: i32, %arg1: memref<32x128xf32, #tpu.memory_space<vmem>>, %arg2: memref<512x128xbf16, #tpu.memory_space<vmem>>, %arg3: memref<1x128xf32, #tpu.memory_space<vmem>>, %arg4: memref<512x128xbf16, #tpu.memory_space<vmem>>, %arg5: memref<1x128xf32, #tpu.memory_space<vmem>>, %arg6: memref<512x128xbf16, #tpu.memory_space<vmem>>, %arg7: memref<1x128xf32, #tpu.memory_space<vmem>>, %arg8: memref<512x128xbf16, #tpu.memory_space<vmem>>, %arg9: memref<1x128xf32, #tpu.memory_space<vmem>>, %arg10: memref<128x64xbf16, #tpu.memory_space<vmem>>, %arg11: memref<1x64xf32, #tpu.memory_space<vmem>>, %arg12: memref<1x64xf32, #tpu.memory_space<vmem>>, %arg13: memref<1x1xf32, #tpu.memory_space<vmem>>, %arg14: memref<2x1xf32, #tpu.memory_space<vmem>>, %arg15: memref<64x128xf32, #tpu.memory_space<vmem>>) attributes {dimension_semantics = [#tpu.dimension_semantics<parallel>], iteration_bounds = array<i64: 1>, scalar_prefetch = 0 : i64, scratch_operands = 1 : i64, tpu.core_type = #tpu.core_type<tc>, window_params = [{transform_indices = @transform_0, window_bounds = array<i64: 32, 128>}, {pipeline_mode = #tpu.pipeline_mode<synchronous>, transform_indices = @transform_1, window_bounds = array<i64: 512, 128>}, {pipeline_mode = #tpu.pipeline_mode<synchronous>, transform_indices = @transform_2, window_bounds = array<i64: 1, 128>}, {pipeline_mode = #tpu.pipeline_mode<synchronous>, transform_indices = @transform_3, window_bounds = array<i64: 512, 128>}, {pipeline_mode = #tpu.pipeline_mode<synchronous>, transform_indices = @transform_4, window_bounds = array<i64: 1, 128>}, {pipeline_mode = #tpu.pipeline_mode<synchronous>, transform_indices = @transform_5, window_bounds = array<i64: 512, 128>}, {pipeline_mode = #tpu.pipeline_mode<synchronous>, transform_indices = @transform_6, window_bounds = array<i64: 1, 128>}, {pipeline_mode = #tpu.pipeline_mode<synchronous>, transform_indices = @transform_7, window_bounds = array<i64: 512, 128>}, {pipeline_mode = #tpu.pipeline_mode<synchronous>, transform_indices = @transform_8, window_bounds = array<i64: 1, 128>}, {pipeline_mode = #tpu.pipeline_mode<synchronous>, transform_indices = @transform_9, window_bounds = array<i64: 128, 64>}, {pipeline_mode = #tpu.pipeline_mode<synchronous>, transform_indices = @transform_10, window_bounds = array<i64: 1, 64>}, {pipeline_mode = #tpu.pipeline_mode<synchronous>, transform_indices = @transform_11, window_bounds = array<i64: 1, 64>}, {pipeline_mode = #tpu.pipeline_mode<synchronous>, transform_indices = @transform_12, window_bounds = array<i64: 1, 1>}, {transform_indices = @transform_13, window_bounds = array<i64: 2, 1>}]} {
    %c0 = arith.constant 0 : index
    %c0_0 = arith.constant 0 : index
    %0 = vector.load %arg1[%c0, %c0_0] : memref<32x128xf32, #tpu.memory_space<vmem>>, vector<32x128xf32>
    %c16 = arith.constant 16 : index
    %c0_1 = arith.constant 0 : index
    %1 = vector.load %arg15[%c16, %c0_1] : memref<64x128xf32, #tpu.memory_space<vmem>>, vector<32x128xf32>
    tpu.vector_store %arg15[%c16, %c0_1], %0 {strides = array<i32>} : memref<64x128xf32, #tpu.memory_space<vmem>>, vector<32x128xf32>,
    %c15 = arith.constant 15 : index
    %c0_2 = arith.constant 0 : index
    %2 = tpu.strided_load %arg15[%c15, %c0_2] {strides = array<i32: 2, 1>} : memref<64x128xf32, #tpu.memory_space<vmem>>, vector<16x128xf32>
    %c16_3 = arith.constant 16 : index
    %c0_4 = arith.constant 0 : index
    %3 = tpu.strided_load %arg15[%c16_3, %c0_4] {strides = array<i32: 2, 1>} : memref<64x128xf32, #tpu.memory_space<vmem>>, vector<16x128xf32>
    %c17 = arith.constant 17 : index
    %c0_5 = arith.constant 0 : index
    %4 = tpu.strided_load %arg15[%c17, %c0_5] {strides = array<i32: 2, 1>} : memref<64x128xf32, #tpu.memory_space<vmem>>, vector<16x128xf32>
    %c18 = arith.constant 18 : index
    %c0_6 = arith.constant 0 : index
    %5 = tpu.strided_load %arg15[%c18, %c0_6] {strides = array<i32: 2, 1>} : memref<64x128xf32, #tpu.memory_space<vmem>>, vector<16x128xf32>
    %6 = tpu.iota {dimensions = array<i32: 0>} : vector<16x128xi32>
    %c7_i32 = arith.constant 7 : i32
    %7 = vector.broadcast %c7_i32 : i32 to vector<16x128xi32>
    %8 = arith.andi %6, %7 : vector<16x128xi32>
    %c0_i32 = arith.constant 0 : i32
    %9 = vector.broadcast %c0_i32 : i32 to vector<16x128xi32>
    %10 = arith.cmpi ne, %8, %9 : vector<16x128xi32>
    %cst = arith.constant 0.000000e+00 : f32
    %11 = vector.broadcast %cst : f32 to vector<16x128xf32>
    %12 = arith.select %10, %2, %11 : vector<16x128xi1>, vector<16x128xf32>
    %c7_i32_7 = arith.constant 7 : i32
    %13 = vector.broadcast %c7_i32_7 : i32 to vector<16x128xi32>
    %14 = arith.cmpi ne, %8, %13 : vector<16x128xi32>
    %cst_8 = arith.constant 0.000000e+00 : f32
    %15 = vector.broadcast %cst_8 : f32 to vector<16x128xf32>
    %16 = arith.select %14, %5, %15 : vector<16x128xi1>, vector<16x128xf32>
    %17 = tpu.concatenate %12, %3, %4, %16 in 1 : vector<16x128xf32>, vector<16x128xf32>, vector<16x128xf32>, vector<16x128xf32> -> vector<16x512xf32>
    %18 = arith.truncf %17 : vector<16x512xf32> to vector<16x512xbf16>
    %c0_9 = arith.constant 0 : index
    %c0_10 = arith.constant 0 : index
    %19 = vector.load %arg2[%c0_9, %c0_10] : memref<512x128xbf16, #tpu.memory_space<vmem>>, vector<512x128xbf16>
    %cst_11 = arith.constant dense<0.000000e+00> : vector<16x128xf32>
    %20 = tpu.matmul %18, %19, %cst_11 {dimension_numbers = #tpu.dot_dimension_numbers<[1], [0], [0], [1], [0, 0, 1, 1], [], []>} : vector<16x512xbf16>, vector<512x128xbf16>, vector<16x128xf32> -> vector<16x128xf32>
    %c0_12 = arith.constant 0 : index
    %c0_13 = arith.constant 0 : index
    %21 = vector.load %arg3[%c0_12, %c0_13] : memref<1x128xf32, #tpu.memory_space<vmem>>, vector<1x128xf32>
    %22 = vector.broadcast %21 : vector<1x128xf32> to vector<16x128xf32>
    %23 = arith.addf %20, %22 : vector<16x128xf32>
    %cst_14 = arith.constant 0.000000e+00 : f32
    %24 = vector.broadcast %cst_14 : f32 to vector<16x128xf32>
    %25 = arith.cmpf oge, %23, %24 : vector<16x128xf32>
    %cst_15 = arith.constant 2.000000e-01 : f32
    %26 = vector.broadcast %cst_15 : f32 to vector<16x128xf32>
    %27 = arith.mulf %26, %23 : vector<16x128xf32>
    %28 = arith.select %25, %23, %27 : vector<16x128xi1>, vector<16x128xf32>
    %c16_16 = arith.constant 16 : index
    %c0_17 = arith.constant 0 : index
    %29 = vector.load %arg15[%c16_16, %c0_17] : memref<64x128xf32, #tpu.memory_space<vmem>>, vector<16x128xf32>
    tpu.vector_store %arg15[%c16_16, %c0_17], %28 {strides = array<i32>} : memref<64x128xf32, #tpu.memory_space<vmem>>, vector<16x128xf32>,
    %c15_18 = arith.constant 15 : index
    %c0_19 = arith.constant 0 : index
    %30 = tpu.strided_load %arg15[%c15_18, %c0_19] {strides = array<i32: 2, 1>} : memref<64x128xf32, #tpu.memory_space<vmem>>, vector<8x128xf32>
    %c16_20 = arith.constant 16 : index
    %c0_21 = arith.constant 0 : index
    %31 = tpu.strided_load %arg15[%c16_20, %c0_21] {strides = array<i32: 2, 1>} : memref<64x128xf32, #tpu.memory_space<vmem>>, vector<8x128xf32>
    %c17_22 = arith.constant 17 : index
    %c0_23 = arith.constant 0 : index
    %32 = tpu.strided_load %arg15[%c17_22, %c0_23] {strides = array<i32: 2, 1>} : memref<64x128xf32, #tpu.memory_space<vmem>>, vector<8x128xf32>
    %c18_24 = arith.constant 18 : index
    %c0_25 = arith.constant 0 : index
    %33 = tpu.strided_load %arg15[%c18_24, %c0_25] {strides = array<i32: 2, 1>} : memref<64x128xf32, #tpu.memory_space<vmem>>, vector<8x128xf32>
    %34 = tpu.iota {dimensions = array<i32: 0>} : vector<8x128xi32>
    %c3_i32 = arith.constant 3 : i32
    %35 = vector.broadcast %c3_i32 : i32 to vector<8x128xi32>
    %36 = arith.andi %34, %35 : vector<8x128xi32>
    %c0_i32_26 = arith.constant 0 : i32
    %37 = vector.broadcast %c0_i32_26 : i32 to vector<8x128xi32>
    %38 = arith.cmpi ne, %36, %37 : vector<8x128xi32>
    %cst_27 = arith.constant 0.000000e+00 : f32
    %39 = vector.broadcast %cst_27 : f32 to vector<8x128xf32>
    %40 = arith.select %38, %30, %39 : vector<8x128xi1>, vector<8x128xf32>
    %c3_i32_28 = arith.constant 3 : i32
    %41 = vector.broadcast %c3_i32_28 : i32 to vector<8x128xi32>
    %42 = arith.cmpi ne, %36, %41 : vector<8x128xi32>
    %cst_29 = arith.constant 0.000000e+00 : f32
    %43 = vector.broadcast %cst_29 : f32 to vector<8x128xf32>
    %44 = arith.select %42, %33, %43 : vector<8x128xi1>, vector<8x128xf32>
    %45 = tpu.concatenate %40, %31, %32, %44 in 1 : vector<8x128xf32>, vector<8x128xf32>, vector<8x128xf32>, vector<8x128xf32> -> vector<8x512xf32>
    %46 = arith.truncf %45 : vector<8x512xf32> to vector<8x512xbf16>
    %c0_30 = arith.constant 0 : index
    %c0_31 = arith.constant 0 : index
    %47 = vector.load %arg4[%c0_30, %c0_31] : memref<512x128xbf16, #tpu.memory_space<vmem>>, vector<512x128xbf16>
    %cst_32 = arith.constant dense<0.000000e+00> : vector<8x128xf32>
    %48 = tpu.matmul %46, %47, %cst_32 {dimension_numbers = #tpu.dot_dimension_numbers<[1], [0], [0], [1], [0, 0, 1, 1], [], []>} : vector<8x512xbf16>, vector<512x128xbf16>, vector<8x128xf32> -> vector<8x128xf32>
    %c0_33 = arith.constant 0 : index
    %c0_34 = arith.constant 0 : index
    %49 = vector.load %arg5[%c0_33, %c0_34] : memref<1x128xf32, #tpu.memory_space<vmem>>, vector<1x128xf32>
    %50 = vector.broadcast %49 : vector<1x128xf32> to vector<8x128xf32>
    %51 = arith.addf %48, %50 : vector<8x128xf32>
    %cst_35 = arith.constant 0.000000e+00 : f32
    %52 = vector.broadcast %cst_35 : f32 to vector<8x128xf32>
    %53 = arith.cmpf oge, %51, %52 : vector<8x128xf32>
    %cst_36 = arith.constant 2.000000e-01 : f32
    %54 = vector.broadcast %cst_36 : f32 to vector<8x128xf32>
    %55 = arith.mulf %54, %51 : vector<8x128xf32>
    %56 = arith.select %53, %51, %55 : vector<8x128xi1>, vector<8x128xf32>
    %c16_37 = arith.constant 16 : index
    %c0_38 = arith.constant 0 : index
    %57 = vector.load %arg15[%c16_37, %c0_38] : memref<64x128xf32, #tpu.memory_space<vmem>>, vector<8x128xf32>
    tpu.vector_store %arg15[%c16_37, %c0_38], %56 {strides = array<i32>} : memref<64x128xf32, #tpu.memory_space<vmem>>, vector<8x128xf32>,
    %c15_39 = arith.constant 15 : index
    %c0_40 = arith.constant 0 : index
    %58 = tpu.strided_load %arg15[%c15_39, %c0_40] {strides = array<i32: 2, 1>} : memref<64x128xf32, #tpu.memory_space<vmem>>, vector<4x128xf32>
    %c16_41 = arith.constant 16 : index
    %c0_42 = arith.constant 0 : index
    %59 = tpu.strided_load %arg15[%c16_41, %c0_42] {strides = array<i32: 2, 1>} : memref<64x128xf32, #tpu.memory_space<vmem>>, vector<4x128xf32>
    %c17_43 = arith.constant 17 : index
    %c0_44 = arith.constant 0 : index
    %60 = tpu.strided_load %arg15[%c17_43, %c0_44] {strides = array<i32: 2, 1>} : memref<64x128xf32, #tpu.memory_space<vmem>>, vector<4x128xf32>
    %c18_45 = arith.constant 18 : index
    %c0_46 = arith.constant 0 : index
    %61 = tpu.strided_load %arg15[%c18_45, %c0_46] {strides = array<i32: 2, 1>} : memref<64x128xf32, #tpu.memory_space<vmem>>, vector<4x128xf32>
    %62 = tpu.iota {dimensions = array<i32: 0>} : vector<4x128xi32>
    %c1_i32 = arith.constant 1 : i32
    %63 = vector.broadcast %c1_i32 : i32 to vector<4x128xi32>
    %64 = arith.andi %62, %63 : vector<4x128xi32>
    %c0_i32_47 = arith.constant 0 : i32
    %65 = vector.broadcast %c0_i32_47 : i32 to vector<4x128xi32>
    %66 = arith.cmpi ne, %64, %65 : vector<4x128xi32>
    %cst_48 = arith.constant 0.000000e+00 : f32
    %67 = vector.broadcast %cst_48 : f32 to vector<4x128xf32>
    %68 = arith.select %66, %58, %67 : vector<4x128xi1>, vector<4x128xf32>
    %c1_i32_49 = arith.constant 1 : i32
    %69 = vector.broadcast %c1_i32_49 : i32 to vector<4x128xi32>
    %70 = arith.cmpi ne, %64, %69 : vector<4x128xi32>
    %cst_50 = arith.constant 0.000000e+00 : f32
    %71 = vector.broadcast %cst_50 : f32 to vector<4x128xf32>
    %72 = arith.select %70, %61, %71 : vector<4x128xi1>, vector<4x128xf32>
    %73 = tpu.concatenate %68, %59, %60, %72 in 1 : vector<4x128xf32>, vector<4x128xf32>, vector<4x128xf32>, vector<4x128xf32> -> vector<4x512xf32>
    %74 = arith.truncf %73 : vector<4x512xf32> to vector<4x512xbf16>
    %c0_51 = arith.constant 0 : index
    %c0_52 = arith.constant 0 : index
    %75 = vector.load %arg6[%c0_51, %c0_52] : memref<512x128xbf16, #tpu.memory_space<vmem>>, vector<512x128xbf16>
    %cst_53 = arith.constant dense<0.000000e+00> : vector<4x128xf32>
    %76 = tpu.matmul %74, %75, %cst_53 {dimension_numbers = #tpu.dot_dimension_numbers<[1], [0], [0], [1], [0, 0, 1, 1], [], []>} : vector<4x512xbf16>, vector<512x128xbf16>, vector<4x128xf32> -> vector<4x128xf32>
    %c0_54 = arith.constant 0 : index
    %c0_55 = arith.constant 0 : index
    %77 = vector.load %arg7[%c0_54, %c0_55] : memref<1x128xf32, #tpu.memory_space<vmem>>, vector<1x128xf32>
    %78 = vector.broadcast %77 : vector<1x128xf32> to vector<4x128xf32>
    %79 = arith.addf %76, %78 : vector<4x128xf32>
    %cst_56 = arith.constant 0.000000e+00 : f32
    %80 = vector.broadcast %cst_56 : f32 to vector<4x128xf32>
    %81 = arith.cmpf oge, %79, %80 : vector<4x128xf32>
    %cst_57 = arith.constant 2.000000e-01 : f32
    %82 = vector.broadcast %cst_57 : f32 to vector<4x128xf32>
    %83 = arith.mulf %82, %79 : vector<4x128xf32>
    %84 = arith.select %81, %79, %83 : vector<4x128xi1>, vector<4x128xf32>
    %c16_58 = arith.constant 16 : index
    %c0_59 = arith.constant 0 : index
    %85 = vector.load %arg15[%c16_58, %c0_59] : memref<64x128xf32, #tpu.memory_space<vmem>>, vector<4x128xf32>
    tpu.vector_store %arg15[%c16_58, %c0_59], %84 {strides = array<i32>} : memref<64x128xf32, #tpu.memory_space<vmem>>, vector<4x128xf32>,
    %c15_60 = arith.constant 15 : index
    %c0_61 = arith.constant 0 : index
    %86 = tpu.strided_load %arg15[%c15_60, %c0_61] {strides = array<i32: 2, 1>} : memref<64x128xf32, #tpu.memory_space<vmem>>, vector<2x128xf32>
    %c16_62 = arith.constant 16 : index
    %c0_63 = arith.constant 0 : index
    %87 = tpu.strided_load %arg15[%c16_62, %c0_63] {strides = array<i32: 2, 1>} : memref<64x128xf32, #tpu.memory_space<vmem>>, vector<2x128xf32>
    %c17_64 = arith.constant 17 : index
    %c0_65 = arith.constant 0 : index
    %88 = tpu.strided_load %arg15[%c17_64, %c0_65] {strides = array<i32: 2, 1>} : memref<64x128xf32, #tpu.memory_space<vmem>>, vector<2x128xf32>
    %c18_66 = arith.constant 18 : index
    %c0_67 = arith.constant 0 : index
    %89 = tpu.strided_load %arg15[%c18_66, %c0_67] {strides = array<i32: 2, 1>} : memref<64x128xf32, #tpu.memory_space<vmem>>, vector<2x128xf32>
    %90 = tpu.iota {dimensions = array<i32: 0>} : vector<2x128xi32>
    %c0_i32_68 = arith.constant 0 : i32
    %91 = vector.broadcast %c0_i32_68 : i32 to vector<2x128xi32>
    %92 = arith.andi %90, %91 : vector<2x128xi32>
    %c0_i32_69 = arith.constant 0 : i32
    %93 = vector.broadcast %c0_i32_69 : i32 to vector<2x128xi32>
    %94 = arith.cmpi ne, %92, %93 : vector<2x128xi32>
    %cst_70 = arith.constant 0.000000e+00 : f32
    %95 = vector.broadcast %cst_70 : f32 to vector<2x128xf32>
    %96 = arith.select %94, %86, %95 : vector<2x128xi1>, vector<2x128xf32>
    %c0_i32_71 = arith.constant 0 : i32
    %97 = vector.broadcast %c0_i32_71 : i32 to vector<2x128xi32>
    %98 = arith.cmpi ne, %92, %97 : vector<2x128xi32>
    %cst_72 = arith.constant 0.000000e+00 : f32
    %99 = vector.broadcast %cst_72 : f32 to vector<2x128xf32>
    %100 = arith.select %98, %89, %99 : vector<2x128xi1>, vector<2x128xf32>
    %101 = tpu.concatenate %96, %87, %88, %100 in 1 : vector<2x128xf32>, vector<2x128xf32>, vector<2x128xf32>, vector<2x128xf32> -> vector<2x512xf32>
    %102 = arith.truncf %101 : vector<2x512xf32> to vector<2x512xbf16>
    %c0_73 = arith.constant 0 : index
    %c0_74 = arith.constant 0 : index
    %103 = vector.load %arg8[%c0_73, %c0_74] : memref<512x128xbf16, #tpu.memory_space<vmem>>, vector<512x128xbf16>
    %cst_75 = arith.constant dense<0.000000e+00> : vector<2x128xf32>
    %104 = tpu.matmul %102, %103, %cst_75 {dimension_numbers = #tpu.dot_dimension_numbers<[1], [0], [0], [1], [0, 0, 1, 1], [], []>} : vector<2x512xbf16>, vector<512x128xbf16>, vector<2x128xf32> -> vector<2x128xf32>
    %c0_76 = arith.constant 0 : index
    %c0_77 = arith.constant 0 : index
    %105 = vector.load %arg9[%c0_76, %c0_77] : memref<1x128xf32, #tpu.memory_space<vmem>>, vector<1x128xf32>
    %106 = vector.broadcast %105 : vector<1x128xf32> to vector<2x128xf32>
    %107 = arith.addf %104, %106 : vector<2x128xf32>
    %cst_78 = arith.constant 0.000000e+00 : f32
    %108 = vector.broadcast %cst_78 : f32 to vector<2x128xf32>
    %109 = arith.cmpf oge, %107, %108 : vector<2x128xf32>
    %cst_79 = arith.constant 2.000000e-01 : f32
    %110 = vector.broadcast %cst_79 : f32 to vector<2x128xf32>
    %111 = arith.mulf %110, %107 : vector<2x128xf32>
    %112 = arith.select %109, %107, %111 : vector<2x128xi1>, vector<2x128xf32>
    %113 = arith.truncf %112 : vector<2x128xf32> to vector<2x128xbf16>
    %c0_80 = arith.constant 0 : index
    %c0_81 = arith.constant 0 : index
    %114 = vector.load %arg10[%c0_80, %c0_81] : memref<128x64xbf16, #tpu.memory_space<vmem>>, vector<128x64xbf16>
    %cst_82 = arith.constant dense<0.000000e+00> : vector<2x64xf32>
    %115 = tpu.matmul %113, %114, %cst_82 {dimension_numbers = #tpu.dot_dimension_numbers<[1], [0], [0], [1], [0, 0, 1, 1], [], []>} : vector<2x128xbf16>, vector<128x64xbf16>, vector<2x64xf32> -> vector<2x64xf32>
    %c0_83 = arith.constant 0 : index
    %c0_84 = arith.constant 0 : index
    %116 = vector.load %arg11[%c0_83, %c0_84] : memref<1x64xf32, #tpu.memory_space<vmem>>, vector<1x64xf32>
    %117 = vector.broadcast %116 : vector<1x64xf32> to vector<2x64xf32>
    %118 = arith.addf %115, %117 : vector<2x64xf32>
    %cst_85 = arith.constant 0.000000e+00 : f32
    %119 = vector.broadcast %cst_85 : f32 to vector<2x64xf32>
    %120 = arith.maximumf %118, %119 : vector<2x64xf32>
    %c0_86 = arith.constant 0 : index
    %c0_87 = arith.constant 0 : index
    %121 = vector.load %arg12[%c0_86, %c0_87] : memref<1x64xf32, #tpu.memory_space<vmem>>, vector<1x64xf32>
    %122 = vector.broadcast %121 : vector<1x64xf32> to vector<2x64xf32>
    %123 = arith.mulf %120, %122 : vector<2x64xf32>
    %cst_88 = arith.constant dense<0.000000e+00> : vector<2xf32>
    %124 = vector.multi_reduction <add>, %123, %cst_88 [1] : vector<2x64xf32> to vector<2xf32>
    %125 = vector.shape_cast %124 : vector<2xf32> to vector<2x1xf32>
    %c0_89 = arith.constant 0 : index
    %c0_90 = arith.constant 0 : index
    %126 = vector.load %arg13[%c0_89, %c0_90] : memref<1x1xf32, #tpu.memory_space<vmem>>, vector<1x1xf32>
    %127 = vector.broadcast %126 : vector<1x1xf32> to vector<2x1xf32>
    %128 = arith.addf %125, %127 : vector<2x1xf32>
    %cst_91 = arith.constant 0.000000e+00 : f32
    %129 = vector.broadcast %cst_91 : f32 to vector<2x1xf32>
    %130 = arith.subf %129, %128 : vector<2x1xf32>
    %131 = math.exp %130 : vector<2x1xf32>
    %cst_92 = arith.constant 1.000000e+00 : f32
    %132 = vector.broadcast %cst_92 : f32 to vector<2x1xf32>
    %133 = arith.addf %132, %131 : vector<2x1xf32>
    %cst_93 = arith.constant 1.000000e+00 : f32
    %134 = vector.broadcast %cst_93 : f32 to vector<2x1xf32>
    %135 = arith.divf %134, %133 : vector<2x1xf32>
    %c0_94 = arith.constant 0 : index
    %c0_95 = arith.constant 0 : index
    %136 = vector.load %arg14[%c0_94, %c0_95] : memref<2x1xf32, #tpu.memory_space<vmem>>, vector<2x1xf32>
    tpu.vector_store %arg14[%c0_94, %c0_95], %135 {strides = array<i32>} : memref<2x1xf32, #tpu.memory_space<vmem>>, vector<2x1xf32>,
    return
  }
  func.func @transform_0(%arg0: i32) -> (i32, i32) {
    %c0_i32 = arith.constant 0 : i32
    %c0_i32_0 = arith.constant 0 : i32
    return %arg0, %c0_i32 : i32, i32
  }
  func.func @transform_1(%arg0: i32) -> (i32, i32) {
    %c0_i32 = arith.constant 0 : i32
    %c0_i32_0 = arith.constant 0 : i32
    %c0_i32_1 = arith.constant 0 : i32
    return %c0_i32, %c0_i32_0 : i32, i32
  }
  func.func @transform_2(%arg0: i32) -> (i32, i32) {
    %c0_i32 = arith.constant 0 : i32
    %c0_i32_0 = arith.constant 0 : i32
    %c0_i32_1 = arith.constant 0 : i32
    return %c0_i32, %c0_i32_0 : i32, i32
  }
  func.func @transform_3(%arg0: i32) -> (i32, i32) {
    %c0_i32 = arith.constant 0 : i32
    %c0_i32_0 = arith.constant 0 : i32
    %c0_i32_1 = arith.constant 0 : i32
    return %c0_i32, %c0_i32_0 : i32, i32
  }
  func.func @transform_4(%arg0: i32) -> (i32, i32) {
    %c0_i32 = arith.constant 0 : i32
    %c0_i32_0 = arith.constant 0 : i32
    %c0_i32_1 = arith.constant 0 : i32
    return %c0_i32, %c0_i32_0 : i32, i32
  }
  func.func @transform_5(%arg0: i32) -> (i32, i32) {
    %c0_i32 = arith.constant 0 : i32
    %c0_i32_0 = arith.constant 0 : i32
    %c0_i32_1 = arith.constant 0 : i32
    return %c0_i32, %c0_i32_0 : i32, i32
  }
  func.func @transform_6(%arg0: i32) -> (i32, i32) {
    %c0_i32 = arith.constant 0 : i32
    %c0_i32_0 = arith.constant 0 : i32
    %c0_i32_1 = arith.constant 0 : i32
    return %c0_i32, %c0_i32_0 : i32, i32
  }
  func.func @transform_7(%arg0: i32) -> (i32, i32) {
    %c0_i32 = arith.constant 0 : i32
    %c0_i32_0 = arith.constant 0 : i32
    %c0_i32_1 = arith.constant 0 : i32
    return %c0_i32, %c0_i32_0 : i32, i32
  }
  func.func @transform_8(%arg0: i32) -> (i32, i32) {
    %c0_i32 = arith.constant 0 : i32
    %c0_i32_0 = arith.constant 0 : i32
    %c0_i32_1 = arith.constant 0 : i32
    return %c0_i32, %c0_i32_0 : i32, i32
  }
  func.func @transform_9(%arg0: i32) -> (i32, i32) {
    %c0_i32 = arith.constant 0 : i32
    %c0_i32_0 = arith.constant 0 : i32
    %c0_i32_1 = arith.constant 0 : i32
    return %c0_i32, %c0_i32_0 : i32, i32
  }
  func.func @transform_10(%arg0: i32) -> (i32, i32) {
    %c0_i32 = arith.constant 0 : i32
    %c0_i32_0 = arith.constant 0 : i32
    %c0_i32_1 = arith.constant 0 : i32
    return %c0_i32, %c0_i32_0 : i32, i32
  }
  func.func @transform_11(%arg0: i32) -> (i32, i32) {
    %c0_i32 = arith.constant 0 : i32
    %c0_i32_0 = arith.constant 0 : i32
    %c0_i32_1 = arith.constant 0 : i32
    return %c0_i32, %c0_i32_0 : i32, i32
  }
  func.func @transform_12(%arg0: i32) -> (i32, i32) {
    %c0_i32 = arith.constant 0 : i32
    %c0_i32_0 = arith.constant 0 : i32
    %c0_i32_1 = arith.constant 0 : i32
    return %c0_i32, %c0_i32_0 : i32, i32
  }
  func.func @transform_13(%arg0: i32) -> (i32, i32) {
    %c0_i32 = arith.constant 0 : i32
    %c0_i32_0 = arith.constant 0 : i32
    return %arg0, %c0_i32 : i32, i32
  }
}

</mosaic_0001>

<llo_original>
// kernel: tile.19
$region0: #{tile.19}
  #allocation0 [shape = 's32[1]{0}', space=sflag, size = 0x4, scoped, tag = 'scoped memory for tile.19']
  %s0 = inlined_call_operand.vmem [shape: f32[16], index: 0, kind: input, shape index: {}]
  %s1 = inlined_call_operand.vmem [shape: f32[8,16], index: 1, kind: output, shape index: {}]
  // Predicated region
  $region2: #{tile.19} parent=0 // pred_check
    _
  $region3: #{tile.19} parent=0 // pred_check_branch
    %3 = sbr.rel (0) target = $region5
  $region4: #{tile.19} parent=0 // pred_region
    _
  $region5: #{tile.19} parent=0 // pred_fallthru
    _
  %v4 = vld [vmem:[%s0] ss:$0 sm:$0xff]
  %5 = vst [vmem:[%s1] sm:$0xff] %v4

// kernel: tile.20
$region0: #{tile.20}
  %s0 = inlined_call_operand.vmem [shape: f32[8,16], index: 0, kind: input, shape index: {}]
  %s1 = inlined_call_operand.vmem [shape: f32[1,128], index: 1, kind: output, shape index: {}]
  $region1: #{tile.20} parent=0
    #allocation0 [shape = 'u8[4096]{0}', space=vmem, size = 0x1000, scoped, tag = 'scoped mem for output reshape']
    %v2 = vld [vmem:[%s0] sm:$0x1]
    %vm3 = vcmask 130048
    %4 = vst.msk [vmem:[#allocation0] sm:$0x1] %vm3, %v2
    %s5 = scalar_lea.vmem %s0, 7
    %v6 = vld [vmem:[%s5] sm:$0x1]
    %7 = vrot.lane.b32.xlu0 %v6, 112
    %v8 = vpop.permute.xlu0 %7
    %vm9 = vcmask 1048448
    %10 = vst.msk [vmem:[#allocation0] sm:$0x1] %vm9, %v8
    %s11 = scalar_lea.vmem %s0, 6
    %v12 = vld [vmem:[%s11] sm:$0x1]
    %13 = vrot.lane.b32.xlu0 %v12, 96
    %v14 = vpop.permute.xlu0 %13
    %vm15 = vcmask 917248
    %16 = vst.msk [vmem:[#allocation0] sm:$0x1] %vm15, %v14
    %s17 = scalar_lea.vmem %s0, 5
    %v18 = vld [vmem:[%s17] sm:$0x1]
    %19 = vrot.lane.b32.xlu0 %v18, 80
    %v20 = vpop.permute.xlu0 %19
    %vm21 = vcmask 786048
    %22 = vst.msk [vmem:[#allocation0] sm:$0x1] %vm21, %v20
    %s23 = scalar_lea.vmem %s0, 4
    %v24 = vld [vmem:[%s23] sm:$0x1]
    %25 = vrot.lane.b32.xlu0 %v24, 64
    %v26 = vpop.permute.xlu0 %25
    %vm27 = vcmask 654848
    %28 = vst.msk [vmem:[#allocation0] sm:$0x1] %vm27, %v26
    %s29 = scalar_lea.vmem %s0, 3
    %v30 = vld [vmem:[%s29] sm:$0x1]
    %31 = vrot.lane.b32.xlu0 %v30, 48
    %v32 = vpop.permute.xlu0 %31
    %vm33 = vcmask 523648
    %34 = vst.msk [vmem:[#allocation0] sm:$0x1] %vm33, %v32
    %s35 = scalar_lea.vmem %s0, 2
    %v36 = vld [vmem:[%s35] sm:$0x1]
    %37 = vrot.lane.b32.xlu0 %v36, 32
    %v38 = vpop.permute.xlu0 %37
    %vm39 = vcmask 392448
    %40 = vst.msk [vmem:[#allocation0] sm:$0x1] %vm39, %v38
    %s41 = scalar_lea.vmem %s0, 1
    %v42 = vld [vmem:[%s41] sm:$0x1]
    %43 = vrot.lane.b32.xlu0 %v42, 16
    %v44 = vpop.permute.xlu0 %43
    %vm45 = vcmask 261248
    %46 = vst.msk [vmem:[#allocation0] sm:$0x1] %vm45, %v44
    %s48 = sshll.u32 1, 1
    %s49 = ssub.s32 %s48, 1
    %v51 = vld [vmem:[#allocation0] sm:%s49]
    %s52 = sshll.u32 1, 1
    %s53 = ssub.s32 %s52, 1
    %54 = vst [vmem:[%s1] sm:%s53] %v51

// kernel: tile.24
$region0: #{tile.24}
  #allocation0 [shape = 's32[1]{0}', space=sflag, size = 0x4, scoped, tag = 'scoped memory for tile.24']
  %s0 = inlined_call_operand.vmem [shape: f32[32], index: 0, kind: input, shape index: {}]
  %s1 = inlined_call_operand.vmem [shape: f32[4,32], index: 1, kind: output, shape index: {}]
  // Predicated region
  $region2: #{tile.24} parent=0 // pred_check
    _
  $region3: #{tile.24} parent=0 // pred_check_branch
    %3 = sbr.rel (0) target = $region5
  $region4: #{tile.24} parent=0 // pred_region
    _
  $region5: #{tile.24} parent=0 // pred_fallthru
    _
  %v4 = vld [vmem:[%s0] ss:$0 sm:$0xff]
  %5 = vst [vmem:[%s1] sm:$0xf] %v4

// kernel: tile.29
$region0: #{tile.29}
  #allocation0 [shape = 's32[1]{0}', space=sflag, size = 0x4, scoped, tag = 'scoped memory for tile.29']
  %s0 = inlined_call_operand.vmem [shape: f32[64], index: 0, kind: input, shape index: {}]
  %s1 = inlined_call_operand.vmem [shape: f32[2,64], index: 1, kind: output, shape index: {}]
  // Predicated region
  $region2: #{tile.29} parent=0 // pred_check
    _
  $region3: #{tile.29} parent=0 // pred_check_branch
    %3 = sbr.rel (0) target = $region5
  $region4: #{tile.29} parent=0 // pred_region
    _
  $region5: #{tile.29} parent=0 // pred_fallthru
    _
  %v4 = vld [vmem:[%s0] ss:$0 sm:$0xff]
  %5 = vst [vmem:[%s1] sm:$0x3] %v4

// kernel: tile.30
$region0: #{tile.30}
  %s0 = inlined_call_operand.vmem [shape: f32[2,64], index: 0, kind: input, shape index: {}]
  %s1 = inlined_call_operand.vmem [shape: f32[1,128], index: 1, kind: output, shape index: {}]
  $region1: #{tile.30} parent=0
    #allocation0 [shape = 'u8[4096]{0}', space=vmem, size = 0x1000, scoped, tag = 'scoped mem for output reshape']
    #allocation1 [shape = 'u8[4096]{0}', space=vmem, size = 0x1000, scoped, tag = 'scoped mem for input reshape']
    %s3 = sshll.u32 1, 2
    %s4 = ssub.s32 %s3, 1
    %v5 = vld [vmem:[%s0] sm:%s4]
    %6 = vst [vmem:[#allocation1] sm:%s4] %v5
    %v7 = vld [vmem:[#allocation1] sm:$0x1]
    %vm8 = vcmask 523264
    %9 = vst.msk [vmem:[#allocation0] sm:$0x1] %vm8, %v7
    %s10 = scalar_lea.vmem [#allocation1], 1
    %v11 = vld [vmem:[%s10] sm:$0x1]
    %12 = vrot.lane.b32.xlu0 %v11, 64
    %v13 = vpop.permute.xlu0 %12
    %vm14 = vcmask 1048064
    %15 = vst.msk [vmem:[#allocation0] sm:$0x1] %vm14, %v13
    %s17 = sshll.u32 1, 1
    %s18 = ssub.s32 %s17, 1
    %v20 = vld [vmem:[#allocation0] sm:%s18]
    %s21 = sshll.u32 1, 1
    %s22 = ssub.s32 %s21, 1
    %23 = vst [vmem:[%s1] sm:%s22] %v20

// kernel: tile.25
$region0: #{tile.25}
  %s0 = inlined_call_operand.vmem [shape: f32[4,32], index: 0, kind: input, shape index: {}]
  %s1 = inlined_call_operand.vmem [shape: f32[1,128], index: 1, kind: output, shape index: {}]
  $region1: #{tile.25} parent=0
    #allocation0 [shape = 'u8[4096]{0}', space=vmem, size = 0x1000, scoped, tag = 'scoped mem for output reshape']
    #allocation1 [shape = 'u8[4096]{0}', space=vmem, size = 0x1000, scoped, tag = 'scoped mem for input reshape']
    %s3 = sshll.u32 1, 4
    %s4 = ssub.s32 %s3, 1
    %v5 = vld [vmem:[%s0] sm:%s4]
    %6 = vst [vmem:[#allocation1] sm:%s4] %v5
    %v7 = vld [vmem:[#allocation1] sm:$0x1]
    %vm8 = vcmask 261120
    %9 = vst.msk [vmem:[#allocation0] sm:$0x1] %vm8, %v7
    %s10 = scalar_lea.vmem [#allocation1], 3
    %v11 = vld [vmem:[%s10] sm:$0x1]
    %12 = vrot.lane.b32.xlu0 %v11, 96
    %v13 = vpop.permute.xlu0 %12
    %vm14 = vcmask 1048320
    %15 = vst.msk [vmem:[#allocation0] sm:$0x1] %vm14, %v13
    %s16 = scalar_lea.vmem [#allocation1], 2
    %v17 = vld [vmem:[%s16] sm:$0x1]
    %18 = vrot.lane.b32.xlu0 %v17, 64
    %v19 = vpop.permute.xlu0 %18
    %vm20 = vcmask 785920
    %21 = vst.msk [vmem:[#allocation0] sm:$0x1] %vm20, %v19
    %s22 = scalar_lea.vmem [#allocation1], 1
    %v23 = vld [vmem:[%s22] sm:$0x1]
    %24 = vrot.lane.b32.xlu0 %v23, 32
    %v25 = vpop.permute.xlu0 %24
    %vm26 = vcmask 523520
    %27 = vst.msk [vmem:[#allocation0] sm:$0x1] %vm26, %v25
    %s29 = sshll.u32 1, 1
    %s30 = ssub.s32 %s29, 1
    %v32 = vld [vmem:[#allocation0] sm:%s30]
    %s33 = sshll.u32 1, 1
    %s34 = ssub.s32 %s33, 1
    %35 = vst [vmem:[%s1] sm:%s34] %v32

// kernel: cross_evaluator_forward.1
$region0: #{cross_evaluator_forward.1}
  #allocation0 [shape = 'u32[]', space=smem, size = 0x4, offset = 0x4, fixed_abs, tag = 'smem constant byte address 0x4 - core index']
  #allocation1 [shape = 'u32[144,128]{1,0:T(1,128)}', space=vmem, size = 0x12000, scoped, tag = 'internal scratch']
  #allocation2 [shape = 'f32[64,128]{1,0:T(8,128)}', space=vmem, size = 0x8000, scoped, tag = 'scratch operand']
  #allocation3 [shape = 'f32[1,1]{1,0:T(1,128)S(1)}', space=vmem, size = 0x200, scoped, tag = 'scoped memory for cross_evaluator_forward.1']
  %s0 = inlined_call_operand.vmem [shape: f32[32,128], index: 0, kind: input, shape index: {}]
  %s1 = inlined_call_operand.vmem [shape: bf16[512,128], index: 1, kind: input, shape index: {}]
  %s2 = inlined_call_operand.vmem [shape: f32[1,128], index: 2, kind: input, shape index: {}]
  %s3 = inlined_call_operand.vmem [shape: bf16[512,128], index: 3, kind: input, shape index: {}]
  %s4 = inlined_call_operand.vmem [shape: f32[1,128], index: 4, kind: input, shape index: {}]
  %s5 = inlined_call_operand.vmem [shape: bf16[512,128], index: 5, kind: input, shape index: {}]
  %s6 = inlined_call_operand.vmem [shape: f32[1,128], index: 6, kind: input, shape index: {}]
  %s7 = inlined_call_operand.vmem [shape: bf16[512,128], index: 7, kind: input, shape index: {}]
  %s8 = inlined_call_operand.vmem [shape: f32[1,128], index: 8, kind: input, shape index: {}]
  %s9 = inlined_call_operand.vmem [shape: bf16[128,64], index: 9, kind: input, shape index: {}]
  %s10 = inlined_call_operand.vmem [shape: f32[1,64], index: 10, kind: input, shape index: {}]
  %s11 = inlined_call_operand.vmem [shape: f32[1,64], index: 11, kind: input, shape index: {}]
  %s12 = inlined_call_operand.<no memory space> [shape: f32[1,1], index: 12, kind: input, shape index: {}]
  %s13 = inlined_call_operand.vmem [shape: f32[2,1], index: 13, kind: output, shape index: {}]
  %s14 = sld [smem:[#allocation0]]
  $region62: #{cross_evaluator_forward.1} parent=0
    _
  %s16 = ssub.s32 1, %s14
  %s17 = scalar_select 0, %s16, %s14
  %v18 = vstv %s12
  %19 = vst [vmem:[#allocation3] sm:$0x1] %v18
  // Predicated region
  $region2: #{cross_evaluator_forward.1} parent=0 // pred_check
    _
  $region3: #{cross_evaluator_forward.1} parent=0 // pred_check_branch
    %21 = sbr.rel (0) target = $region5
  $region4: #{cross_evaluator_forward.1} parent=0 // pred_region
    _
  $region5: #{cross_evaluator_forward.1} parent=0 // pred_fallthru
    _
  // Predicated region
  $region6: #{cross_evaluator_forward.1} parent=0 // pred_check
    _
  $region7: #{cross_evaluator_forward.1} parent=0 // pred_check_branch
    %23 = sbr.rel (0) target = $region9
  $region8: #{cross_evaluator_forward.1} parent=0 // pred_region
    _
  $region9: #{cross_evaluator_forward.1} parent=0 // pred_fallthru
    _
  // Predicated region
  $region10: #{cross_evaluator_forward.1} parent=0 // pred_check
    _
  $region11: #{cross_evaluator_forward.1} parent=0 // pred_check_branch
    %25 = sbr.rel (0) target = $region13
  $region12: #{cross_evaluator_forward.1} parent=0 // pred_region
    _
  $region13: #{cross_evaluator_forward.1} parent=0 // pred_fallthru
    _
  // Predicated region
  $region14: #{cross_evaluator_forward.1} parent=0 // pred_check
    _
  $region15: #{cross_evaluator_forward.1} parent=0 // pred_check_branch
    %27 = sbr.rel (0) target = $region17
  $region16: #{cross_evaluator_forward.1} parent=0 // pred_region
    _
  $region17: #{cross_evaluator_forward.1} parent=0 // pred_fallthru
    _
  // Predicated region
  $region18: #{cross_evaluator_forward.1} parent=0 // pred_check
    _
  $region19: #{cross_evaluator_forward.1} parent=0 // pred_check_branch
    %29 = sbr.rel (0) target = $region21
  $region20: #{cross_evaluator_forward.1} parent=0 // pred_region
    _
  $region21: #{cross_evaluator_forward.1} parent=0 // pred_fallthru
    _
  // Predicated region
  $region22: #{cross_evaluator_forward.1} parent=0 // pred_check
    _
  $region23: #{cross_evaluator_forward.1} parent=0 // pred_check_branch
    %31 = sbr.rel (0) target = $region25
  $region24: #{cross_evaluator_forward.1} parent=0 // pred_region
    _
  $region25: #{cross_evaluator_forward.1} parent=0 // pred_fallthru
    _
  // Predicated region
  $region26: #{cross_evaluator_forward.1} parent=0 // pred_check
    _
  $region27: #{cross_evaluator_forward.1} parent=0 // pred_check_branch
    %33 = sbr.rel (0) target = $region29
  $region28: #{cross_evaluator_forward.1} parent=0 // pred_region
    _
  $region29: #{cross_evaluator_forward.1} parent=0 // pred_fallthru
    _
  // Predicated region
  $region30: #{cross_evaluator_forward.1} parent=0 // pred_check
    _
  $region31: #{cross_evaluator_forward.1} parent=0 // pred_check_branch
    %35 = sbr.rel (0) target = $region33
  $region32: #{cross_evaluator_forward.1} parent=0 // pred_region
    _
  $region33: #{cross_evaluator_forward.1} parent=0 // pred_fallthru
    _
  // Predicated region
  $region34: #{cross_evaluator_forward.1} parent=0 // pred_check
    _
  $region35: #{cross_evaluator_forward.1} parent=0 // pred_check_branch
    %37 = sbr.rel (0) target = $region37
  $region36: #{cross_evaluator_forward.1} parent=0 // pred_region
    _
  $region37: #{cross_evaluator_forward.1} parent=0 // pred_fallthru
    _
  // Predicated region
  $region38: #{cross_evaluator_forward.1} parent=0 // pred_check
    _
  $region39: #{cross_evaluator_forward.1} parent=0 // pred_check_branch
    %39 = sbr.rel (0) target = $region41
  $region40: #{cross_evaluator_forward.1} parent=0 // pred_region
    _
  $region41: #{cross_evaluator_forward.1} parent=0 // pred_fallthru
    _
  // Predicated region
  $region42: #{cross_evaluator_forward.1} parent=0 // pred_check
    _
  $region43: #{cross_evaluator_forward.1} parent=0 // pred_check_branch
    %41 = sbr.rel (0) target = $region45
  $region44: #{cross_evaluator_forward.1} parent=0 // pred_region
    _
  $region45: #{cross_evaluator_forward.1} parent=0 // pred_fallthru
    _
  // Predicated region
  $region46: #{cross_evaluator_forward.1} parent=0 // pred_check
    _
  $region47: #{cross_evaluator_forward.1} parent=0 // pred_check_branch
    %43 = sbr.rel (0) target = $region49
  $region48: #{cross_evaluator_forward.1} parent=0 // pred_region
    _
  $region49: #{cross_evaluator_forward.1} parent=0 // pred_fallthru
    _
  // Predicated region
  $region50: #{cross_evaluator_forward.1} parent=0 // pred_check
    _
  $region51: #{cross_evaluator_forward.1} parent=0 // pred_check_branch
    %45 = sbr.rel (0) target = $region53
  $region52: #{cross_evaluator_forward.1} parent=0 // pred_region
    _
  $region53: #{cross_evaluator_forward.1} parent=0 // pred_fallthru
    _
  %v47 = vld [vmem:[%s0] sm:$0xff]
  %v48 = vld [vmem:[%s0 + $0x8] sm:$0xff]
  %v49 = vld [vmem:[%s0 + $0x10] sm:$0xff]
  %v50 = vld [vmem:[%s0 + $0x18] sm:$0xff]
  %51 = vst [vmem:[#allocation2 + $0x10] sm:$0xff] %v47
  %52 = vst [vmem:[#allocation2 + $0x18] sm:$0xff] %v48
  %53 = vst [vmem:[#allocation2 + $0x20] sm:$0xff] %v49
  %54 = vst [vmem:[#allocation2 + $0x28] sm:$0xff] %v50
  %s55 = scalar_lea.vmem [#allocation2], 15
  %v56 = vld [vmem:[%s55] ss:$2 sm:$0xff]
  %s57 = scalar_lea.vmem [#allocation2], 31
  %v58 = vld [vmem:[%s57] ss:$2 sm:$0xff]
  %s59 = scalar_lea.vmem [#allocation2], 16
  %v60 = vld [vmem:[%s59] ss:$2 sm:$0xff]
  %s61 = scalar_lea.vmem [#allocation2], 32
  %v62 = vld [vmem:[%s61] ss:$2 sm:$0xff]
  %s63 = scalar_lea.vmem [#allocation2], 17
  %v64 = vld [vmem:[%s63] ss:$2 sm:$0xff]
  %s65 = scalar_lea.vmem [#allocation2], 33
  %v66 = vld [vmem:[%s65] ss:$2 sm:$0xff]
  %s67 = scalar_lea.vmem [#allocation2], 18
  %v68 = vld [vmem:[%s67] ss:$2 sm:$0xff]
  %s69 = scalar_lea.vmem [#allocation2], 34
  %v70 = vld [vmem:[%s69] ss:$2 sm:$0xff]
  %v71 = vlaneseq
  %v72 = vshrl.u32 %v71, 7
  %v73 = vadd.s32 %v72, 8
  %v74 = vand.u32 %v72, 7
  %v75 = vand.u32 %v73, 7
  %vm76 = vcmp.ne.s32.totalorder %v74, 0
  %vm77 = vcmp.ne.s32.totalorder %v75, 0
  %v78 = vsel %vm76, %v56, 0.0
  %v79 = vsel %vm77, %v58, 0.0
  %vm80 = vcmp.ne.s32.totalorder %v74, 7
  %vm81 = vcmp.ne.s32.totalorder %v75, 7
  %v82 = vsel %vm80, %v68, 0.0
  %v83 = vsel %vm81, %v70, 0.0
  %v84 = vpack.c.bf16 %v79, %v78
  %v85 = vpack.c.bf16 %v62, %v60
  %v86 = vpack.c.bf16 %v66, %v64
  %v87 = vpack.c.bf16 %v83, %v82
  %v88 = vld [vmem:[%s1] sm:$0xf]
  %v89 = vld [vmem:[%s1 + $0x4] sm:$0xf]
  %v90 = vld [vmem:[%s1 + $0x8] sm:$0xf]
  %v91 = vld [vmem:[%s1 + $0xc] sm:$0xf]
  %v92 = vld [vmem:[%s1 + $0x10] sm:$0xf]
  %v93 = vld [vmem:[%s1 + $0x14] sm:$0xf]
  %v94 = vld [vmem:[%s1 + $0x18] sm:$0xf]
  %v95 = vld [vmem:[%s1 + $0x1c] sm:$0xf]
  %v96 = vld [vmem:[%s1 + $0x20] sm:$0xf]
  %v97 = vld [vmem:[%s1 + $0x24] sm:$0xf]
  %v98 = vld [vmem:[%s1 + $0x28] sm:$0xf]
  %v99 = vld [vmem:[%s1 + $0x2c] sm:$0xf]
  %v100 = vld [vmem:[%s1 + $0x30] sm:$0xf]
  %v101 = vld [vmem:[%s1 + $0x34] sm:$0xf]
  %v102 = vld [vmem:[%s1 + $0x38] sm:$0xf]
  %v103 = vld [vmem:[%s1 + $0x3c] sm:$0xf]
  %v104 = vld [vmem:[%s1 + $0x40] sm:$0xf]
  %v105 = vld [vmem:[%s1 + $0x44] sm:$0xf]
  %v106 = vld [vmem:[%s1 + $0x48] sm:$0xf]
  %v107 = vld [vmem:[%s1 + $0x4c] sm:$0xf]
  %v108 = vld [vmem:[%s1 + $0x50] sm:$0xf]
  %v109 = vld [vmem:[%s1 + $0x54] sm:$0xf]
  %v110 = vld [vmem:[%s1 + $0x58] sm:$0xf]
  %v111 = vld [vmem:[%s1 + $0x5c] sm:$0xf]
  %v112 = vld [vmem:[%s1 + $0x60] sm:$0xf]
  %v113 = vld [vmem:[%s1 + $0x64] sm:$0xf]
  %v114 = vld [vmem:[%s1 + $0x68] sm:$0xf]
  %v115 = vld [vmem:[%s1 + $0x6c] sm:$0xf]
  %v116 = vld [vmem:[%s1 + $0x70] sm:$0xf]
  %v117 = vld [vmem:[%s1 + $0x74] sm:$0xf]
  %v118 = vld [vmem:[%s1 + $0x78] sm:$0xf]
  %v119 = vld [vmem:[%s1 + $0x7c] sm:$0xf]
  %v120 = vld [vmem:[%s1 + $0x80] sm:$0xf]
  %v121 = vld [vmem:[%s1 + $0x84] sm:$0xf]
  %v122 = vld [vmem:[%s1 + $0x88] sm:$0xf]
  %v123 = vld [vmem:[%s1 + $0x8c] sm:$0xf]
  %v124 = vld [vmem:[%s1 + $0x90] sm:$0xf]
  %v125 = vld [vmem:[%s1 + $0x94] sm:$0xf]
  %v126 = vld [vmem:[%s1 + $0x98] sm:$0xf]
  %v127 = vld [vmem:[%s1 + $0x9c] sm:$0xf]
  %v128 = vld [vmem:[%s1 + $0xa0] sm:$0xf]
  %v129 = vld [vmem:[%s1 + $0xa4] sm:$0xf]
  %v130 = vld [vmem:[%s1 + $0xa8] sm:$0xf]
  %v131 = vld [vmem:[%s1 + $0xac] sm:$0xf]
  %v132 = vld [vmem:[%s1 + $0xb0] sm:$0xf]
  %v133 = vld [vmem:[%s1 + $0xb4] sm:$0xf]
  %v134 = vld [vmem:[%s1 + $0xb8] sm:$0xf]
  %v135 = vld [vmem:[%s1 + $0xbc] sm:$0xf]
  %v136 = vld [vmem:[%s1 + $0xc0] sm:$0xf]
  %v137 = vld [vmem:[%s1 + $0xc4] sm:$0xf]
  %v138 = vld [vmem:[%s1 + $0xc8] sm:$0xf]
  %v139 = vld [vmem:[%s1 + $0xcc] sm:$0xf]
  %v140 = vld [vmem:[%s1 + $0xd0] sm:$0xf]
  %v141 = vld [vmem:[%s1 + $0xd4] sm:$0xf]
  %v142 = vld [vmem:[%s1 + $0xd8] sm:$0xf]
  %v143 = vld [vmem:[%s1 + $0xdc] sm:$0xf]
  %v144 = vld [vmem:[%s1 + $0xe0] sm:$0xf]
  %v145 = vld [vmem:[%s1 + $0xe4] sm:$0xf]
  %v146 = vld [vmem:[%s1 + $0xe8] sm:$0xf]
  %v147 = vld [vmem:[%s1 + $0xec] sm:$0xf]
  %v148 = vld [vmem:[%s1 + $0xf0] sm:$0xf]
  %v149 = vld [vmem:[%s1 + $0xf4] sm:$0xf]
  %v150 = vld [vmem:[%s1 + $0xf8] sm:$0xf]
  %v151 = vld [vmem:[%s1 + $0xfc] sm:$0xf]
  %v152 = vld [vmem:[%s2] sm:$0x1]
  %v154 = vlaneseq
  %v155 = vshrl.u32 %v154, 7
  %v156 = vsub.s32 0, %v155
  %v157 = vrot.slane %v152, %v156
  %v223 = vunpack.c.l.b16 %v88
  %v224 = vunpack.c.l.b16 %v89
  %v225 = vunpack.c.l.b16 %v90
  %v226 = vunpack.c.l.b16 %v91
  %v227 = vunpack.c.l.b16 %v92
  %v228 = vunpack.c.l.b16 %v93
  %v229 = vunpack.c.l.b16 %v94
  %v230 = vunpack.c.l.b16 %v95
  %v231 = vunpack.c.l.b16 %v96
  %v232 = vunpack.c.l.b16 %v97
  %v233 = vunpack.c.l.b16 %v98
  %v234 = vunpack.c.l.b16 %v99
  %v235 = vunpack.c.l.b16 %v100
  %v236 = vunpack.c.l.b16 %v101
  %v237 = vunpack.c.l.b16 %v102
  %v238 = vunpack.c.l.b16 %v103
  %v239 = vunpack.c.l.b16 %v104
  %v240 = vunpack.c.l.b16 %v105
  %v241 = vunpack.c.l.b16 %v106
  %v242 = vunpack.c.l.b16 %v107
  %v243 = vunpack.c.l.b16 %v108
  %v244 = vunpack.c.l.b16 %v109
  %v245 = vunpack.c.l.b16 %v110
  %v246 = vunpack.c.l.b16 %v111
  %v247 = vunpack.c.l.b16 %v112
  %v248 = vunpack.c.l.b16 %v113
  %v249 = vunpack.c.l.b16 %v114
  %v250 = vunpack.c.l.b16 %v115
  %v251 = vunpack.c.l.b16 %v116
  %v252 = vunpack.c.l.b16 %v117
  %v253 = vunpack.c.l.b16 %v118
  %v254 = vunpack.c.l.b16 %v119
  %v255 = vunpack.c.l.b16 %v120
  %v256 = vunpack.c.l.b16 %v121
  %v257 = vunpack.c.l.b16 %v122
  %v258 = vunpack.c.l.b16 %v123
  %v259 = vunpack.c.l.b16 %v124
  %v260 = vunpack.c.l.b16 %v125
  %v261 = vunpack.c.l.b16 %v126
  %v262 = vunpack.c.l.b16 %v127
  %v263 = vunpack.c.l.b16 %v128
  %v264 = vunpack.c.l.b16 %v129
  %v265 = vunpack.c.l.b16 %v130
  %v266 = vunpack.c.l.b16 %v131
  %v267 = vunpack.c.l.b16 %v132
  %v268 = vunpack.c.l.b16 %v133
  %v269 = vunpack.c.l.b16 %v134
  %v270 = vunpack.c.l.b16 %v135
  %v271 = vunpack.c.l.b16 %v136
  %v272 = vunpack.c.l.b16 %v137
  %v273 = vunpack.c.l.b16 %v138
  %v274 = vunpack.c.l.b16 %v139
  %v275 = vunpack.c.l.b16 %v140
  %v276 = vunpack.c.l.b16 %v141
  %v277 = vunpack.c.l.b16 %v142
  %v278 = vunpack.c.l.b16 %v143
  %v279 = vunpack.c.l.b16 %v144
  %v280 = vunpack.c.l.b16 %v145
  %v281 = vunpack.c.l.b16 %v146
  %v282 = vunpack.c.l.b16 %v147
  %v283 = vunpack.c.l.b16 %v148
  %v284 = vunpack.c.l.b16 %v149
  %v285 = vunpack.c.l.b16 %v150
  %v286 = vunpack.c.l.b16 %v151
  %v287 = vpack.c.b16 %v224, %v223
  %v288 = vpack.c.b16 %v226, %v225
  %v289 = vpack.c.b16 %v228, %v227
  %v290 = vpack.c.b16 %v230, %v229
  %v291 = vpack.c.b16 %v232, %v231
  %v292 = vpack.c.b16 %v234, %v233
  %v293 = vpack.c.b16 %v236, %v235
  %v294 = vpack.c.b16 %v238, %v237
  %v295 = vpack.c.b16 %v240, %v239
  %v296 = vpack.c.b16 %v242, %v241
  %v297 = vpack.c.b16 %v244, %v243
  %v298 = vpack.c.b16 %v246, %v245
  %v299 = vpack.c.b16 %v248, %v247
  %v300 = vpack.c.b16 %v250, %v249
  %v301 = vpack.c.b16 %v252, %v251
  %v302 = vpack.c.b16 %v254, %v253
  %v303 = vpack.c.b16 %v256, %v255
  %v304 = vpack.c.b16 %v258, %v257
  %v305 = vpack.c.b16 %v260, %v259
  %v306 = vpack.c.b16 %v262, %v261
  %v307 = vpack.c.b16 %v264, %v263
  %v308 = vpack.c.b16 %v266, %v265
  %v309 = vpack.c.b16 %v268, %v267
  %v310 = vpack.c.b16 %v270, %v269
  %v311 = vpack.c.b16 %v272, %v271
  %v312 = vpack.c.b16 %v274, %v273
  %v313 = vpack.c.b16 %v276, %v275
  %v314 = vpack.c.b16 %v278, %v277
  %v315 = vpack.c.b16 %v280, %v279
  %v316 = vpack.c.b16 %v282, %v281
  %v317 = vpack.c.b16 %v284, %v283
  %v318 = vpack.c.b16 %v286, %v285
  %351 = vmatprep.subr.bf16.mxu0 0
  %352 = vmatpush1.bf16.msra.mxu0 %v294
  %353 = vmatprep.subr.bf16.mxu0 0
  %354 = vmatpush1.bf16.msra.mxu0 %v293
  %355 = vmatprep.subr.bf16.mxu0 0
  %356 = vmatpush1.bf16.msra.mxu0 %v292
  %357 = vmatprep.subr.bf16.mxu0 0
  %358 = vmatpush1.bf16.msra.mxu0 %v291
  %359 = vmatprep.subr.bf16.mxu0 0
  %360 = vmatpush1.bf16.msra.mxu0 %v290
  %361 = vmatprep.subr.bf16.mxu0 0
  %362 = vmatpush1.bf16.msra.mxu0 %v289
  %363 = vmatprep.subr.bf16.mxu0 0
  %364 = vmatpush1.bf16.msra.mxu0 %v288
  %365 = vmatprep.subr.bf16.mxu0 0
  %366 = vmatpush1.bf16.msra.mxu0 %v287
  %367 = vmatprep.subr.bf16.mxu0 0
  %368 = vmatpush2.bf16.msra.mxu0 %v302
  %369 = vmatprep.subr.bf16.mxu0 0
  %370 = vmatpush2.bf16.msra.mxu0 %v301
  %371 = vmatprep.subr.bf16.mxu0 0
  %372 = vmatpush2.bf16.msra.mxu0 %v300
  %373 = vmatprep.subr.bf16.mxu0 0
  %374 = vmatpush2.bf16.msra.mxu0 %v299
  %375 = vmatprep.subr.bf16.mxu0 0
  %376 = vmatpush2.bf16.msra.mxu0 %v298
  %377 = vmatprep.subr.bf16.mxu0 0
  %378 = vmatpush2.bf16.msra.mxu0 %v297
  %379 = vmatprep.subr.bf16.mxu0 0
  %380 = vmatpush2.bf16.msra.mxu0 %v296
  %381 = vmatprep.subr.bf16.mxu0 0
  %382 = vmatpush2.bf16.msra.mxu0 %v295
  %383 = vmatprep.mubr.bf16.mxu0 %v85
  %384 = vmatmul.mubr.bf16.gmra.mxu0 %v84
  %v385 = vpop.f32.mrf.mxu0
  %v386 = vadd.f32 %v157, %v385
  %v387 = vpop.f32.mrf.mxu0
  %v388 = vpop.f32.mrf.mxu0
  %v389 = vadd.f32 %v157, %v388
  %v390 = vpop.f32.mrf.mxu0
  %391 = vdwg.mxu0
  %392 = vmatprep.subr.bf16.mxu0 0
  %393 = vmatpush1.bf16.msra.mxu0 %v310
  %394 = vmatprep.subr.bf16.mxu0 0
  %395 = vmatpush1.bf16.msra.mxu0 %v309
  %396 = vmatprep.subr.bf16.mxu0 0
  %397 = vmatpush1.bf16.msra.mxu0 %v308
  %398 = vmatprep.subr.bf16.mxu0 0
  %399 = vmatpush1.bf16.msra.mxu0 %v307
  %400 = vmatprep.subr.bf16.mxu0 0
  %401 = vmatpush1.bf16.msra.mxu0 %v306
  %402 = vmatprep.subr.bf16.mxu0 0
  %403 = vmatpush1.bf16.msra.mxu0 %v305
  %404 = vmatprep.subr.bf16.mxu0 0
  %405 = vmatpush1.bf16.msra.mxu0 %v304
  %406 = vmatprep.subr.bf16.mxu0 0
  %407 = vmatpush1.bf16.msra.mxu0 %v303
  %408 = vmatprep.subr.bf16.mxu0 0
  %409 = vmatpush2.bf16.msra.mxu0 %v318
  %410 = vmatprep.subr.bf16.mxu0 0
  %411 = vmatpush2.bf16.msra.mxu0 %v317
  %412 = vmatprep.subr.bf16.mxu0 0
  %413 = vmatpush2.bf16.msra.mxu0 %v316
  %414 = vmatprep.subr.bf16.mxu0 0
  %415 = vmatpush2.bf16.msra.mxu0 %v315
  %416 = vmatprep.subr.bf16.mxu0 0
  %417 = vmatpush2.bf16.msra.mxu0 %v314
  %418 = vmatprep.subr.bf16.mxu0 0
  %419 = vmatpush2.bf16.msra.mxu0 %v313
  %420 = vmatprep.subr.bf16.mxu0 0
  %421 = vmatpush2.bf16.msra.mxu0 %v312
  %422 = vmatprep.subr.bf16.mxu0 0
  %423 = vmatpush2.bf16.msra.mxu0 %v311
  %424 = vmatprep.mubr.bf16.mxu0 %v87
  %425 = vmatmul.mubr.bf16.gmra.mxu0 %v86
  %v426 = vpop.f32.mrf.mxu0
  %v427 = vadd.f32 %v386, %v426
  %v428 = vpop.f32.mrf.mxu0
  %v429 = vpop.f32.mrf.mxu0
  %v430 = vadd.f32 %v389, %v429
  %v431 = vpop.f32.mrf.mxu0
  %432 = vdwg.mxu0
  %vm433 = vcmp.ge.f32.partialorder %v427, 0.0
  %vm434 = vcmp.ge.f32.partialorder %v430, 0.0
  %v435 = vmul.f32 %v427, 0.2
  %v436 = vmul.f32 %v430, 0.2
  %v437 = vsel %vm433, %v427, %v435
  %v438 = vsel %vm434, %v430, %v436
  %439 = vst [vmem:[#allocation2 + $0x10] sm:$0xff] %v437
  %440 = vst [vmem:[#allocation2 + $0x18] sm:$0xff] %v438
  %v441 = vld [vmem:[%s55] ss:$2 sm:$0xff]
  %v442 = vld [vmem:[%s59] ss:$2 sm:$0xff]
  %v443 = vld [vmem:[%s63] ss:$2 sm:$0xff]
  %v444 = vld [vmem:[%s67] ss:$2 sm:$0xff]
  %v445 = vand.u32 %v72, 3
  %vm446 = vcmp.ne.s32.totalorder %v445, 0
  %v447 = vsel %vm446, %v441, 0.0
  %vm448 = vcmp.ne.s32.totalorder %v445, 3
  %v449 = vsel %vm448, %v444, 0.0
  %v450 = vpack.c.bf16 %v447, %v447
  %v451 = vpack.c.bf16 %v442, %v442
  %v452 = vpack.c.bf16 %v443, %v443
  %v453 = vpack.c.bf16 %v449, %v449
  %v454 = vld [vmem:[%s3] sm:$0xf]
  %v455 = vld [vmem:[%s3 + $0x4] sm:$0xf]
  %v456 = vld [vmem:[%s3 + $0x8] sm:$0xf]
  %v457 = vld [vmem:[%s3 + $0xc] sm:$0xf]
  %v458 = vld [vmem:[%s3 + $0x10] sm:$0xf]
  %v459 = vld [vmem:[%s3 + $0x14] sm:$0xf]
  %v460 = vld [vmem:[%s3 + $0x18] sm:$0xf]
  %v461 = vld [vmem:[%s3 + $0x1c] sm:$0xf]
  %v462 = vld [vmem:[%s3 + $0x20] sm:$0xf]
  %v463 = vld [vmem:[%s3 + $0x24] sm:$0xf]
  %v464 = vld [vmem:[%s3 + $0x28] sm:$0xf]
  %v465 = vld [vmem:[%s3 + $0x2c] sm:$0xf]
  %v466 = vld [vmem:[%s3 + $0x30] sm:$0xf]
  %v467 = vld [vmem:[%s3 + $0x34] sm:$0xf]
  %v468 = vld [vmem:[%s3 + $0x38] sm:$0xf]
  %v469 = vld [vmem:[%s3 + $0x3c] sm:$0xf]
  %v470 = vld [vmem:[%s3 + $0x40] sm:$0xf]
  %v471 = vld [vmem:[%s3 + $0x44] sm:$0xf]
  %v472 = vld [vmem:[%s3 + $0x48] sm:$0xf]
  %v473 = vld [vmem:[%s3 + $0x4c] sm:$0xf]
  %v474 = vld [vmem:[%s3 + $0x50] sm:$0xf]
  %v475 = vld [vmem:[%s3 + $0x54] sm:$0xf]
  %v476 = vld [vmem:[%s3 + $0x58] sm:$0xf]
  %v477 = vld [vmem:[%s3 + $0x5c] sm:$0xf]
  %v478 = vld [vmem:[%s3 + $0x60] sm:$0xf]
  %v479 = vld [vmem:[%s3 + $0x64] sm:$0xf]
  %v480 = vld [vmem:[%s3 + $0x68] sm:$0xf]
  %v481 = vld [vmem:[%s3 + $0x6c] sm:$0xf]
  %v482 = vld [vmem:[%s3 + $0x70] sm:$0xf]
  %v483 = vld [vmem:[%s3 + $0x74] sm:$0xf]
  %v484 = vld [vmem:[%s3 + $0x78] sm:$0xf]
  %v485 = vld [vmem:[%s3 + $0x7c] sm:$0xf]
  %v486 = vld [vmem:[%s3 + $0x80] sm:$0xf]
  %v487 = vld [vmem:[%s3 + $0x84] sm:$0xf]
  %v488 = vld [vmem:[%s3 + $0x88] sm:$0xf]
  %v489 = vld [vmem:[%s3 + $0x8c] sm:$0xf]
  %v490 = vld [vmem:[%s3 + $0x90] sm:$0xf]
  %v491 = vld [vmem:[%s3 + $0x94] sm:$0xf]
  %v492 = vld [vmem:[%s3 + $0x98] sm:$0xf]
  %v493 = vld [vmem:[%s3 + $0x9c] sm:$0xf]
  %v494 = vld [vmem:[%s3 + $0xa0] sm:$0xf]
  %v495 = vld [vmem:[%s3 + $0xa4] sm:$0xf]
  %v496 = vld [vmem:[%s3 + $0xa8] sm:$0xf]
  %v497 = vld [vmem:[%s3 + $0xac] sm:$0xf]
  %v498 = vld [vmem:[%s3 + $0xb0] sm:$0xf]
  %v499 = vld [vmem:[%s3 + $0xb4] sm:$0xf]
  %v500 = vld [vmem:[%s3 + $0xb8] sm:$0xf]
  %v501 = vld [vmem:[%s3 + $0xbc] sm:$0xf]
  %v502 = vld [vmem:[%s3 + $0xc0] sm:$0xf]
  %v503 = vld [vmem:[%s3 + $0xc4] sm:$0xf]
  %v504 = vld [vmem:[%s3 + $0xc8] sm:$0xf]
  %v505 = vld [vmem:[%s3 + $0xcc] sm:$0xf]
  %v506 = vld [vmem:[%s3 + $0xd0] sm:$0xf]
  %v507 = vld [vmem:[%s3 + $0xd4] sm:$0xf]
  %v508 = vld [vmem:[%s3 + $0xd8] sm:$0xf]
  %v509 = vld [vmem:[%s3 + $0xdc] sm:$0xf]
  %v510 = vld [vmem:[%s3 + $0xe0] sm:$0xf]
  %v511 = vld [vmem:[%s3 + $0xe4] sm:$0xf]
  %v512 = vld [vmem:[%s3 + $0xe8] sm:$0xf]
  %v513 = vld [vmem:[%s3 + $0xec] sm:$0xf]
  %v514 = vld [vmem:[%s3 + $0xf0] sm:$0xf]
  %v515 = vld [vmem:[%s3 + $0xf4] sm:$0xf]
  %v516 = vld [vmem:[%s3 + $0xf8] sm:$0xf]
  %v517 = vld [vmem:[%s3 + $0xfc] sm:$0xf]
  %v518 = vld [vmem:[%s4] sm:$0x1]
  %v520 = vlaneseq
  %v521 = vshrl.u32 %v520, 7
  %v522 = vsub.s32 0, %v521
  %v523 = vrot.slane %v518, %v522
  %v589 = vunpack.c.l.b16 %v454
  %v590 = vunpack.c.l.b16 %v455
  %v591 = vunpack.c.l.b16 %v456
  %v592 = vunpack.c.l.b16 %v457
  %v593 = vunpack.c.l.b16 %v458
  %v594 = vunpack.c.l.b16 %v459
  %v595 = vunpack.c.l.b16 %v460
  %v596 = vunpack.c.l.b16 %v461
  %v597 = vunpack.c.l.b16 %v462
  %v598 = vunpack.c.l.b16 %v463
  %v599 = vunpack.c.l.b16 %v464
  %v600 = vunpack.c.l.b16 %v465
  %v601 = vunpack.c.l.b16 %v466
  %v602 = vunpack.c.l.b16 %v467
  %v603 = vunpack.c.l.b16 %v468
  %v604 = vunpack.c.l.b16 %v469
  %v605 = vunpack.c.l.b16 %v470
  %v606 = vunpack.c.l.b16 %v471
  %v607 = vunpack.c.l.b16 %v472
  %v608 = vunpack.c.l.b16 %v473
  %v609 = vunpack.c.l.b16 %v474
  %v610 = vunpack.c.l.b16 %v475
  %v611 = vunpack.c.l.b16 %v476
  %v612 = vunpack.c.l.b16 %v477
  %v613 = vunpack.c.l.b16 %v478
  %v614 = vunpack.c.l.b16 %v479
  %v615 = vunpack.c.l.b16 %v480
  %v616 = vunpack.c.l.b16 %v481
  %v617 = vunpack.c.l.b16 %v482
  %v618 = vunpack.c.l.b16 %v483
  %v619 = vunpack.c.l.b16 %v484
  %v620 = vunpack.c.l.b16 %v485
  %v621 = vunpack.c.l.b16 %v486
  %v622 = vunpack.c.l.b16 %v487
  %v623 = vunpack.c.l.b16 %v488
  %v624 = vunpack.c.l.b16 %v489
  %v625 = vunpack.c.l.b16 %v490
  %v626 = vunpack.c.l.b16 %v491
  %v627 = vunpack.c.l.b16 %v492
  %v628 = vunpack.c.l.b16 %v493
  %v629 = vunpack.c.l.b16 %v494
  %v630 = vunpack.c.l.b16 %v495
  %v631 = vunpack.c.l.b16 %v496
  %v632 = vunpack.c.l.b16 %v497
  %v633 = vunpack.c.l.b16 %v498
  %v634 = vunpack.c.l.b16 %v499
  %v635 = vunpack.c.l.b16 %v500
  %v636 = vunpack.c.l.b16 %v501
  %v637 = vunpack.c.l.b16 %v502
  %v638 = vunpack.c.l.b16 %v503
  %v639 = vunpack.c.l.b16 %v504
  %v640 = vunpack.c.l.b16 %v505
  %v641 = vunpack.c.l.b16 %v506
  %v642 = vunpack.c.l.b16 %v507
  %v643 = vunpack.c.l.b16 %v508
  %v644 = vunpack.c.l.b16 %v509
  %v645 = vunpack.c.l.b16 %v510
  %v646 = vunpack.c.l.b16 %v511
  %v647 = vunpack.c.l.b16 %v512
  %v648 = vunpack.c.l.b16 %v513
  %v649 = vunpack.c.l.b16 %v514
  %v650 = vunpack.c.l.b16 %v515
  %v651 = vunpack.c.l.b16 %v516
  %v652 = vunpack.c.l.b16 %v517
  %v653 = vpack.c.b16 %v590, %v589
  %v654 = vpack.c.b16 %v592, %v591
  %v655 = vpack.c.b16 %v594, %v593
  %v656 = vpack.c.b16 %v596, %v595
  %v657 = vpack.c.b16 %v598, %v597
  %v658 = vpack.c.b16 %v600, %v599
  %v659 = vpack.c.b16 %v602, %v601
  %v660 = vpack.c.b16 %v604, %v603
  %v661 = vpack.c.b16 %v606, %v605
  %v662 = vpack.c.b16 %v608, %v607
  %v663 = vpack.c.b16 %v610, %v609
  %v664 = vpack.c.b16 %v612, %v611
  %v665 = vpack.c.b16 %v614, %v613
  %v666 = vpack.c.b16 %v616, %v615
  %v667 = vpack.c.b16 %v618, %v617
  %v668 = vpack.c.b16 %v620, %v619
  %v669 = vpack.c.b16 %v622, %v621
  %v670 = vpack.c.b16 %v624, %v623
  %v671 = vpack.c.b16 %v626, %v625
  %v672 = vpack.c.b16 %v628, %v627
  %v673 = vpack.c.b16 %v630, %v629
  %v674 = vpack.c.b16 %v632, %v631
  %v675 = vpack.c.b16 %v634, %v633
  %v676 = vpack.c.b16 %v636, %v635
  %v677 = vpack.c.b16 %v638, %v637
  %v678 = vpack.c.b16 %v640, %v639
  %v679 = vpack.c.b16 %v642, %v641
  %v680 = vpack.c.b16 %v644, %v643
  %v681 = vpack.c.b16 %v646, %v645
  %v682 = vpack.c.b16 %v648, %v647
  %v683 = vpack.c.b16 %v650, %v649
  %v684 = vpack.c.b16 %v652, %v651
  %717 = vmatprep.subr.bf16.mxu0 0
  %718 = vmatpush1.bf16.msra.mxu0 %v660
  %719 = vmatprep.subr.bf16.mxu0 0
  %720 = vmatpush1.bf16.msra.mxu0 %v659
  %721 = vmatprep.subr.bf16.mxu0 0
  %722 = vmatpush1.bf16.msra.mxu0 %v658
  %723 = vmatprep.subr.bf16.mxu0 0
  %724 = vmatpush1.bf16.msra.mxu0 %v657
  %725 = vmatprep.subr.bf16.mxu0 0
  %726 = vmatpush1.bf16.msra.mxu0 %v656
  %727 = vmatprep.subr.bf16.mxu0 0
  %728 = vmatpush1.bf16.msra.mxu0 %v655
  %729 = vmatprep.subr.bf16.mxu0 0
  %730 = vmatpush1.bf16.msra.mxu0 %v654
  %731 = vmatprep.subr.bf16.mxu0 0
  %732 = vmatpush1.bf16.msra.mxu0 %v653
  %733 = vmatprep.subr.bf16.mxu0 0
  %734 = vmatpush2.bf16.msra.mxu0 %v668
  %735 = vmatprep.subr.bf16.mxu0 0
  %736 = vmatpush2.bf16.msra.mxu0 %v667
  %737 = vmatprep.subr.bf16.mxu0 0
  %738 = vmatpush2.bf16.msra.mxu0 %v666
  %739 = vmatprep.subr.bf16.mxu0 0
  %740 = vmatpush2.bf16.msra.mxu0 %v665
  %741 = vmatprep.subr.bf16.mxu0 0
  %742 = vmatpush2.bf16.msra.mxu0 %v664
  %743 = vmatprep.subr.bf16.mxu0 0
  %744 = vmatpush2.bf16.msra.mxu0 %v663
  %745 = vmatprep.subr.bf16.mxu0 0
  %746 = vmatpush2.bf16.msra.mxu0 %v662
  %747 = vmatprep.subr.bf16.mxu0 0
  %748 = vmatpush2.bf16.msra.mxu0 %v661
  %749 = vmatprep.mubr.bf16.mxu0 %v451
  %750 = vmatmul.mubr.bf16.gmra.mxu0 %v450
  %v751 = vpop.f32.mrf.mxu0
  %v752 = vadd.f32 %v523, %v751
  %v753 = vpop.f32.mrf.mxu0
  %v754 = vpop.f32.mrf.mxu0
  %v755 = vpop.f32.mrf.mxu0
  %756 = vdwg.mxu0
  %757 = vmatprep.subr.bf16.mxu0 0
  %758 = vmatpush1.bf16.msra.mxu0 %v676
  %759 = vmatprep.subr.bf16.mxu0 0
  %760 = vmatpush1.bf16.msra.mxu0 %v675
  %761 = vmatprep.subr.bf16.mxu0 0
  %762 = vmatpush1.bf16.msra.mxu0 %v674
  %763 = vmatprep.subr.bf16.mxu0 0
  %764 = vmatpush1.bf16.msra.mxu0 %v673
  %765 = vmatprep.subr.bf16.mxu0 0
  %766 = vmatpush1.bf16.msra.mxu0 %v672
  %767 = vmatprep.subr.bf16.mxu0 0
  %768 = vmatpush1.bf16.msra.mxu0 %v671
  %769 = vmatprep.subr.bf16.mxu0 0
  %770 = vmatpush1.bf16.msra.mxu0 %v670
  %771 = vmatprep.subr.bf16.mxu0 0
  %772 = vmatpush1.bf16.msra.mxu0 %v669
  %773 = vmatprep.subr.bf16.mxu0 0
  %774 = vmatpush2.bf16.msra.mxu0 %v684
  %775 = vmatprep.subr.bf16.mxu0 0
  %776 = vmatpush2.bf16.msra.mxu0 %v683
  %777 = vmatprep.subr.bf16.mxu0 0
  %778 = vmatpush2.bf16.msra.mxu0 %v682
  %779 = vmatprep.subr.bf16.mxu0 0
  %780 = vmatpush2.bf16.msra.mxu0 %v681
  %781 = vmatprep.subr.bf16.mxu0 0
  %782 = vmatpush2.bf16.msra.mxu0 %v680
  %783 = vmatprep.subr.bf16.mxu0 0
  %784 = vmatpush2.bf16.msra.mxu0 %v679
  %785 = vmatprep.subr.bf16.mxu0 0
  %786 = vmatpush2.bf16.msra.mxu0 %v678
  %787 = vmatprep.subr.bf16.mxu0 0
  %788 = vmatpush2.bf16.msra.mxu0 %v677
  %789 = vmatprep.mubr.bf16.mxu0 %v453
  %790 = vmatmul.mubr.bf16.gmra.mxu0 %v452
  %v791 = vpop.f32.mrf.mxu0
  %v792 = vadd.f32 %v752, %v791
  %v793 = vpop.f32.mrf.mxu0
  %v794 = vpop.f32.mrf.mxu0
  %v795 = vpop.f32.mrf.mxu0
  %796 = vdwg.mxu0
  %vm797 = vcmp.ge.f32.partialorder %v792, 0.0
  %v798 = vmul.f32 %v792, 0.2
  %v799 = vsel %vm797, %v792, %v798
  %800 = vst [vmem:[#allocation2 + $0x10] sm:$0xff] %v799
  %v801 = vld [vmem:[%s55] ss:$2 sm:$0xf]
  %v802 = vld [vmem:[%s59] ss:$2 sm:$0xf]
  %v803 = vld [vmem:[%s63] ss:$2 sm:$0xf]
  %v804 = vld [vmem:[%s67] ss:$2 sm:$0xf]
  %v805 = vand.u32 %v72, 1
  %vm806 = vcmp.ne.s32.totalorder %v805, 0
  %v807 = vsel %vm806, %v801, 0.0
  %vm808 = vcmp.ne.s32.totalorder %v805, 1
  %v809 = vsel %vm808, %v804, 0.0
  %v810 = vpack.c.bf16 %v807, %v807
  %v811 = vpack.c.bf16 %v802, %v802
  %v812 = vpack.c.bf16 %v803, %v803
  %v813 = vpack.c.bf16 %v809, %v809
  %v814 = vld [vmem:[%s5] sm:$0xf]
  %v815 = vld [vmem:[%s5 + $0x4] sm:$0xf]
  %v816 = vld [vmem:[%s5 + $0x8] sm:$0xf]
  %v817 = vld [vmem:[%s5 + $0xc] sm:$0xf]
  %v818 = vld [vmem:[%s5 + $0x10] sm:$0xf]
  %v819 = vld [vmem:[%s5 + $0x14] sm:$0xf]
  %v820 = vld [vmem:[%s5 + $0x18] sm:$0xf]
  %v821 = vld [vmem:[%s5 + $0x1c] sm:$0xf]
  %v822 = vld [vmem:[%s5 + $0x20] sm:$0xf]
  %v823 = vld [vmem:[%s5 + $0x24] sm:$0xf]
  %v824 = vld [vmem:[%s5 + $0x28] sm:$0xf]
  %v825 = vld [vmem:[%s5 + $0x2c] sm:$0xf]
  %v826 = vld [vmem:[%s5 + $0x30] sm:$0xf]
  %v827 = vld [vmem:[%s5 + $0x34] sm:$0xf]
  %v828 = vld [vmem:[%s5 + $0x38] sm:$0xf]
  %v829 = vld [vmem:[%s5 + $0x3c] sm:$0xf]
  %v830 = vld [vmem:[%s5 + $0x40] sm:$0xf]
  %v831 = vld [vmem:[%s5 + $0x44] sm:$0xf]
  %v832 = vld [vmem:[%s5 + $0x48] sm:$0xf]
  %v833 = vld [vmem:[%s5 + $0x4c] sm:$0xf]
  %v834 = vld [vmem:[%s5 + $0x50] sm:$0xf]
  %v835 = vld [vmem:[%s5 + $0x54] sm:$0xf]
  %v836 = vld [vmem:[%s5 + $0x58] sm:$0xf]
  %v837 = vld [vmem:[%s5 + $0x5c] sm:$0xf]
  %v838 = vld [vmem:[%s5 + $0x60] sm:$0xf]
  %v839 = vld [vmem:[%s5 + $0x64] sm:$0xf]
  %v840 = vld [vmem:[%s5 + $0x68] sm:$0xf]
  %v841 = vld [vmem:[%s5 + $0x6c] sm:$0xf]
  %v842 = vld [vmem:[%s5 + $0x70] sm:$0xf]
  %v843 = vld [vmem:[%s5 + $0x74] sm:$0xf]
  %v844 = vld [vmem:[%s5 + $0x78] sm:$0xf]
  %v845 = vld [vmem:[%s5 + $0x7c] sm:$0xf]
  %v846 = vld [vmem:[%s5 + $0x80] sm:$0xf]
  %v847 = vld [vmem:[%s5 + $0x84] sm:$0xf]
  %v848 = vld [vmem:[%s5 + $0x88] sm:$0xf]
  %v849 = vld [vmem:[%s5 + $0x8c] sm:$0xf]
  %v850 = vld [vmem:[%s5 + $0x90] sm:$0xf]
  %v851 = vld [vmem:[%s5 + $0x94] sm:$0xf]
  %v852 = vld [vmem:[%s5 + $0x98] sm:$0xf]
  %v853 = vld [vmem:[%s5 + $0x9c] sm:$0xf]
  %v854 = vld [vmem:[%s5 + $0xa0] sm:$0xf]
  %v855 = vld [vmem:[%s5 + $0xa4] sm:$0xf]
  %v856 = vld [vmem:[%s5 + $0xa8] sm:$0xf]
  %v857 = vld [vmem:[%s5 + $0xac] sm:$0xf]
  %v858 = vld [vmem:[%s5 + $0xb0] sm:$0xf]
  %v859 = vld [vmem:[%s5 + $0xb4] sm:$0xf]
  %v860 = vld [vmem:[%s5 + $0xb8] sm:$0xf]
  %v861 = vld [vmem:[%s5 + $0xbc] sm:$0xf]
  %v862 = vld [vmem:[%s5 + $0xc0] sm:$0xf]
  %v863 = vld [vmem:[%s5 + $0xc4] sm:$0xf]
  %v864 = vld [vmem:[%s5 + $0xc8] sm:$0xf]
  %v865 = vld [vmem:[%s5 + $0xcc] sm:$0xf]
  %v866 = vld [vmem:[%s5 + $0xd0] sm:$0xf]
  %v867 = vld [vmem:[%s5 + $0xd4] sm:$0xf]
  %v868 = vld [vmem:[%s5 + $0xd8] sm:$0xf]
  %v869 = vld [vmem:[%s5 + $0xdc] sm:$0xf]
  %v870 = vld [vmem:[%s5 + $0xe0] sm:$0xf]
  %v871 = vld [vmem:[%s5 + $0xe4] sm:$0xf]
  %v872 = vld [vmem:[%s5 + $0xe8] sm:$0xf]
  %v873 = vld [vmem:[%s5 + $0xec] sm:$0xf]
  %v874 = vld [vmem:[%s5 + $0xf0] sm:$0xf]
  %v875 = vld [vmem:[%s5 + $0xf4] sm:$0xf]
  %v876 = vld [vmem:[%s5 + $0xf8] sm:$0xf]
  %v877 = vld [vmem:[%s5 + $0xfc] sm:$0xf]
  %v878 = vld [vmem:[%s6] sm:$0x1]
  %v880 = vlaneseq
  %v881 = vshrl.u32 %v880, 7
  %v882 = vsub.s32 0, %v881
  %v883 = vrot.slane %v878, %v882
  %v949 = vunpack.c.l.b16 %v814
  %v950 = vunpack.c.l.b16 %v815
  %v951 = vunpack.c.l.b16 %v816
  %v952 = vunpack.c.l.b16 %v817
  %v953 = vunpack.c.l.b16 %v818
  %v954 = vunpack.c.l.b16 %v819
  %v955 = vunpack.c.l.b16 %v820
  %v956 = vunpack.c.l.b16 %v821
  %v957 = vunpack.c.l.b16 %v822
  %v958 = vunpack.c.l.b16 %v823
  %v959 = vunpack.c.l.b16 %v824
  %v960 = vunpack.c.l.b16 %v825
  %v961 = vunpack.c.l.b16 %v826
  %v962 = vunpack.c.l.b16 %v827
  %v963 = vunpack.c.l.b16 %v828
  %v964 = vunpack.c.l.b16 %v829
  %v965 = vunpack.c.l.b16 %v830
  %v966 = vunpack.c.l.b16 %v831
  %v967 = vunpack.c.l.b16 %v832
  %v968 = vunpack.c.l.b16 %v833
  %v969 = vunpack.c.l.b16 %v834
  %v970 = vunpack.c.l.b16 %v835
  %v971 = vunpack.c.l.b16 %v836
  %v972 = vunpack.c.l.b16 %v837
  %v973 = vunpack.c.l.b16 %v838
  %v974 = vunpack.c.l.b16 %v839
  %v975 = vunpack.c.l.b16 %v840
  %v976 = vunpack.c.l.b16 %v841
  %v977 = vunpack.c.l.b16 %v842
  %v978 = vunpack.c.l.b16 %v843
  %v979 = vunpack.c.l.b16 %v844
  %v980 = vunpack.c.l.b16 %v845
  %v981 = vunpack.c.l.b16 %v846
  %v982 = vunpack.c.l.b16 %v847
  %v983 = vunpack.c.l.b16 %v848
  %v984 = vunpack.c.l.b16 %v849
  %v985 = vunpack.c.l.b16 %v850
  %v986 = vunpack.c.l.b16 %v851
  %v987 = vunpack.c.l.b16 %v852
  %v988 = vunpack.c.l.b16 %v853
  %v989 = vunpack.c.l.b16 %v854
  %v990 = vunpack.c.l.b16 %v855
  %v991 = vunpack.c.l.b16 %v856
  %v992 = vunpack.c.l.b16 %v857
  %v993 = vunpack.c.l.b16 %v858
  %v994 = vunpack.c.l.b16 %v859
  %v995 = vunpack.c.l.b16 %v860
  %v996 = vunpack.c.l.b16 %v861
  %v997 = vunpack.c.l.b16 %v862
  %v998 = vunpack.c.l.b16 %v863
  %v999 = vunpack.c.l.b16 %v864
  %v1000 = vunpack.c.l.b16 %v865
  %v1001 = vunpack.c.l.b16 %v866
  %v1002 = vunpack.c.l.b16 %v867
  %v1003 = vunpack.c.l.b16 %v868
  %v1004 = vunpack.c.l.b16 %v869
  %v1005 = vunpack.c.l.b16 %v870
  %v1006 = vunpack.c.l.b16 %v871
  %v1007 = vunpack.c.l.b16 %v872
  %v1008 = vunpack.c.l.b16 %v873
  %v1009 = vunpack.c.l.b16 %v874
  %v1010 = vunpack.c.l.b16 %v875
  %v1011 = vunpack.c.l.b16 %v876
  %v1012 = vunpack.c.l.b16 %v877
  %v1013 = vpack.c.b16 %v950, %v949
  %v1014 = vpack.c.b16 %v952, %v951
  %v1015 = vpack.c.b16 %v954, %v953
  %v1016 = vpack.c.b16 %v956, %v955
  %v1017 = vpack.c.b16 %v958, %v957
  %v1018 = vpack.c.b16 %v960, %v959
  %v1019 = vpack.c.b16 %v962, %v961
  %v1020 = vpack.c.b16 %v964, %v963
  %v1021 = vpack.c.b16 %v966, %v965
  %v1022 = vpack.c.b16 %v968, %v967
  %v1023 = vpack.c.b16 %v970, %v969
  %v1024 = vpack.c.b16 %v972, %v971
  %v1025 = vpack.c.b16 %v974, %v973
  %v1026 = vpack.c.b16 %v976, %v975
  %v1027 = vpack.c.b16 %v978, %v977
  %v1028 = vpack.c.b16 %v980, %v979
  %v1029 = vpack.c.b16 %v982, %v981
  %v1030 = vpack.c.b16 %v984, %v983
  %v1031 = vpack.c.b16 %v986, %v985
  %v1032 = vpack.c.b16 %v988, %v987
  %v1033 = vpack.c.b16 %v990, %v989
  %v1034 = vpack.c.b16 %v992, %v991
  %v1035 = vpack.c.b16 %v994, %v993
  %v1036 = vpack.c.b16 %v996, %v995
  %v1037 = vpack.c.b16 %v998, %v997
  %v1038 = vpack.c.b16 %v1000, %v999
  %v1039 = vpack.c.b16 %v1002, %v1001
  %v1040 = vpack.c.b16 %v1004, %v1003
  %v1041 = vpack.c.b16 %v1006, %v1005
  %v1042 = vpack.c.b16 %v1008, %v1007
  %v1043 = vpack.c.b16 %v1010, %v1009
  %v1044 = vpack.c.b16 %v1012, %v1011
  %1077 = vmatprep.subr.bf16.mxu0 0
  %1078 = vmatpush1.bf16.msra.mxu0 %v1020
  %1079 = vmatprep.subr.bf16.mxu0 0
  %1080 = vmatpush1.bf16.msra.mxu0 %v1019
  %1081 = vmatprep.subr.bf16.mxu0 0
  %1082 = vmatpush1.bf16.msra.mxu0 %v1018
  %1083 = vmatprep.subr.bf16.mxu0 0
  %1084 = vmatpush1.bf16.msra.mxu0 %v1017
  %1085 = vmatprep.subr.bf16.mxu0 0
  %1086 = vmatpush1.bf16.msra.mxu0 %v1016
  %1087 = vmatprep.subr.bf16.mxu0 0
  %1088 = vmatpush1.bf16.msra.mxu0 %v1015
  %1089 = vmatprep.subr.bf16.mxu0 0
  %1090 = vmatpush1.bf16.msra.mxu0 %v1014
  %1091 = vmatprep.subr.bf16.mxu0 0
  %1092 = vmatpush1.bf16.msra.mxu0 %v1013
  %1093 = vmatprep.subr.bf16.mxu0 0
  %1094 = vmatpush2.bf16.msra.mxu0 %v1028
  %1095 = vmatprep.subr.bf16.mxu0 0
  %1096 = vmatpush2.bf16.msra.mxu0 %v1027
  %1097 = vmatprep.subr.bf16.mxu0 0
  %1098 = vmatpush2.bf16.msra.mxu0 %v1026
  %1099 = vmatprep.subr.bf16.mxu0 0
  %1100 = vmatpush2.bf16.msra.mxu0 %v1025
  %1101 = vmatprep.subr.bf16.mxu0 0
  %1102 = vmatpush2.bf16.msra.mxu0 %v1024
  %1103 = vmatprep.subr.bf16.mxu0 0
  %1104 = vmatpush2.bf16.msra.mxu0 %v1023
  %1105 = vmatprep.subr.bf16.mxu0 0
  %1106 = vmatpush2.bf16.msra.mxu0 %v1022
  %1107 = vmatprep.subr.bf16.mxu0 0
  %1108 = vmatpush2.bf16.msra.mxu0 %v1021
  %1109 = vmatprep.mubr.bf16.mxu0 %v811
  %1110 = vmatmul.mubr.bf16.gmra.mxu0 %v810
  %v1111 = vpop.f32.mrf.mxu0
  %v1112 = vadd.f32 %v883, %v1111
  %v1113 = vpop.f32.mrf.mxu0
  %v1114 = vpop.f32.mrf.mxu0
  %v1115 = vpop.f32.mrf.mxu0
  %1116 = vdwg.mxu0
  %1117 = vmatprep.subr.bf16.mxu0 0
  %1118 = vmatpush1.bf16.msra.mxu0 %v1036
  %1119 = vmatprep.subr.bf16.mxu0 0
  %1120 = vmatpush1.bf16.msra.mxu0 %v1035
  %1121 = vmatprep.subr.bf16.mxu0 0
  %1122 = vmatpush1.bf16.msra.mxu0 %v1034
  %1123 = vmatprep.subr.bf16.mxu0 0
  %1124 = vmatpush1.bf16.msra.mxu0 %v1033
  %1125 = vmatprep.subr.bf16.mxu0 0
  %1126 = vmatpush1.bf16.msra.mxu0 %v1032
  %1127 = vmatprep.subr.bf16.mxu0 0
  %1128 = vmatpush1.bf16.msra.mxu0 %v1031
  %1129 = vmatprep.subr.bf16.mxu0 0
  %1130 = vmatpush1.bf16.msra.mxu0 %v1030
  %1131 = vmatprep.subr.bf16.mxu0 0
  %1132 = vmatpush1.bf16.msra.mxu0 %v1029
  %1133 = vmatprep.subr.bf16.mxu0 0
  %1134 = vmatpush2.bf16.msra.mxu0 %v1044
  %1135 = vmatprep.subr.bf16.mxu0 0
  %1136 = vmatpush2.bf16.msra.mxu0 %v1043
  %1137 = vmatprep.subr.bf16.mxu0 0
  %1138 = vmatpush2.bf16.msra.mxu0 %v1042
  %1139 = vmatprep.subr.bf16.mxu0 0
  %1140 = vmatpush2.bf16.msra.mxu0 %v1041
  %1141 = vmatprep.subr.bf16.mxu0 0
  %1142 = vmatpush2.bf16.msra.mxu0 %v1040
  %1143 = vmatprep.subr.bf16.mxu0 0
  %1144 = vmatpush2.bf16.msra.mxu0 %v1039
  %1145 = vmatprep.subr.bf16.mxu0 0
  %1146 = vmatpush2.bf16.msra.mxu0 %v1038
  %1147 = vmatprep.subr.bf16.mxu0 0
  %1148 = vmatpush2.bf16.msra.mxu0 %v1037
  %1149 = vmatprep.mubr.bf16.mxu0 %v813
  %1150 = vmatmul.mubr.bf16.gmra.mxu0 %v812
  %v1151 = vpop.f32.mrf.mxu0
  %v1152 = vadd.f32 %v1112, %v1151
  %v1153 = vpop.f32.mrf.mxu0
  %v1154 = vpop.f32.mrf.mxu0
  %v1155 = vpop.f32.mrf.mxu0
  %1156 = vdwg.mxu0
  %vm1157 = vcmp.ge.f32.partialorder %v1152, 0.0
  %v1158 = vmul.f32 %v1152, 0.2
  %v1159 = vsel %vm1157, %v1152, %v1158
  %1160 = vst [vmem:[#allocation2 + $0x10] sm:$0xf] %v1159
  %v1161 = vld [vmem:[%s59] ss:$2 sm:$0x3]
  %v1162 = vld [vmem:[%s63] ss:$2 sm:$0x3]
  %v1163 = vpack.c.bf16 0.0, 0.0
  %v1164 = vpack.c.bf16 %v1161, %v1161
  %v1165 = vpack.c.bf16 %v1162, %v1162
  %v1166 = vld [vmem:[%s7] sm:$0xf]
  %v1167 = vld [vmem:[%s7 + $0x4] sm:$0xf]
  %v1168 = vld [vmem:[%s7 + $0x8] sm:$0xf]
  %v1169 = vld [vmem:[%s7 + $0xc] sm:$0xf]
  %v1170 = vld [vmem:[%s7 + $0x10] sm:$0xf]
  %v1171 = vld [vmem:[%s7 + $0x14] sm:$0xf]
  %v1172 = vld [vmem:[%s7 + $0x18] sm:$0xf]
  %v1173 = vld [vmem:[%s7 + $0x1c] sm:$0xf]
  %v1174 = vld [vmem:[%s7 + $0x20] sm:$0xf]
  %v1175 = vld [vmem:[%s7 + $0x24] sm:$0xf]
  %v1176 = vld [vmem:[%s7 + $0x28] sm:$0xf]
  %v1177 = vld [vmem:[%s7 + $0x2c] sm:$0xf]
  %v1178 = vld [vmem:[%s7 + $0x30] sm:$0xf]
  %v1179 = vld [vmem:[%s7 + $0x34] sm:$0xf]
  %v1180 = vld [vmem:[%s7 + $0x38] sm:$0xf]
  %v1181 = vld [vmem:[%s7 + $0x3c] sm:$0xf]
  %v1182 = vld [vmem:[%s7 + $0x40] sm:$0xf]
  %v1183 = vld [vmem:[%s7 + $0x44] sm:$0xf]
  %v1184 = vld [vmem:[%s7 + $0x48] sm:$0xf]
  %v1185 = vld [vmem:[%s7 + $0x4c] sm:$0xf]
  %v1186 = vld [vmem:[%s7 + $0x50] sm:$0xf]
  %v1187 = vld [vmem:[%s7 + $0x54] sm:$0xf]
  %v1188 = vld [vmem:[%s7 + $0x58] sm:$0xf]
  %v1189 = vld [vmem:[%s7 + $0x5c] sm:$0xf]
  %v1190 = vld [vmem:[%s7 + $0x60] sm:$0xf]
  %v1191 = vld [vmem:[%s7 + $0x64] sm:$0xf]
  %v1192 = vld [vmem:[%s7 + $0x68] sm:$0xf]
  %v1193 = vld [vmem:[%s7 + $0x6c] sm:$0xf]
  %v1194 = vld [vmem:[%s7 + $0x70] sm:$0xf]
  %v1195 = vld [vmem:[%s7 + $0x74] sm:$0xf]
  %v1196 = vld [vmem:[%s7 + $0x78] sm:$0xf]
  %v1197 = vld [vmem:[%s7 + $0x7c] sm:$0xf]
  %v1198 = vld [vmem:[%s7 + $0x80] sm:$0xf]
  %v1199 = vld [vmem:[%s7 + $0x84] sm:$0xf]
  %v1200 = vld [vmem:[%s7 + $0x88] sm:$0xf]
  %v1201 = vld [vmem:[%s7 + $0x8c] sm:$0xf]
  %v1202 = vld [vmem:[%s7 + $0x90] sm:$0xf]
  %v1203 = vld [vmem:[%s7 + $0x94] sm:$0xf]
  %v1204 = vld [vmem:[%s7 + $0x98] sm:$0xf]
  %v1205 = vld [vmem:[%s7 + $0x9c] sm:$0xf]
  %v1206 = vld [vmem:[%s7 + $0xa0] sm:$0xf]
  %v1207 = vld [vmem:[%s7 + $0xa4] sm:$0xf]
  %v1208 = vld [vmem:[%s7 + $0xa8] sm:$0xf]
  %v1209 = vld [vmem:[%s7 + $0xac] sm:$0xf]
  %v1210 = vld [vmem:[%s7 + $0xb0] sm:$0xf]
  %v1211 = vld [vmem:[%s7 + $0xb4] sm:$0xf]
  %v1212 = vld [vmem:[%s7 + $0xb8] sm:$0xf]
  %v1213 = vld [vmem:[%s7 + $0xbc] sm:$0xf]
  %v1214 = vld [vmem:[%s7 + $0xc0] sm:$0xf]
  %v1215 = vld [vmem:[%s7 + $0xc4] sm:$0xf]
  %v1216 = vld [vmem:[%s7 + $0xc8] sm:$0xf]
  %v1217 = vld [vmem:[%s7 + $0xcc] sm:$0xf]
  %v1218 = vld [vmem:[%s7 + $0xd0] sm:$0xf]
  %v1219 = vld [vmem:[%s7 + $0xd4] sm:$0xf]
  %v1220 = vld [vmem:[%s7 + $0xd8] sm:$0xf]
  %v1221 = vld [vmem:[%s7 + $0xdc] sm:$0xf]
  %v1222 = vld [vmem:[%s7 + $0xe0] sm:$0xf]
  %v1223 = vld [vmem:[%s7 + $0xe4] sm:$0xf]
  %v1224 = vld [vmem:[%s7 + $0xe8] sm:$0xf]
  %v1225 = vld [vmem:[%s7 + $0xec] sm:$0xf]
  %v1226 = vld [vmem:[%s7 + $0xf0] sm:$0xf]
  %v1227 = vld [vmem:[%s7 + $0xf4] sm:$0xf]
  %v1228 = vld [vmem:[%s7 + $0xf8] sm:$0xf]
  %v1229 = vld [vmem:[%s7 + $0xfc] sm:$0xf]
  %v1230 = vld [vmem:[%s8] sm:$0x1]
  %v1232 = vlaneseq
  %v1233 = vshrl.u32 %v1232, 7
  %v1234 = vsub.s32 0, %v1233
  %v1235 = vrot.slane %v1230, %v1234
  %v1301 = vunpack.c.l.b16 %v1166
  %v1302 = vunpack.c.l.b16 %v1167
  %v1303 = vunpack.c.l.b16 %v1168
  %v1304 = vunpack.c.l.b16 %v1169
  %v1305 = vunpack.c.l.b16 %v1170
  %v1306 = vunpack.c.l.b16 %v1171
  %v1307 = vunpack.c.l.b16 %v1172
  %v1308 = vunpack.c.l.b16 %v1173
  %v1309 = vunpack.c.l.b16 %v1174
  %v1310 = vunpack.c.l.b16 %v1175
  %v1311 = vunpack.c.l.b16 %v1176
  %v1312 = vunpack.c.l.b16 %v1177
  %v1313 = vunpack.c.l.b16 %v1178
  %v1314 = vunpack.c.l.b16 %v1179
  %v1315 = vunpack.c.l.b16 %v1180
  %v1316 = vunpack.c.l.b16 %v1181
  %v1317 = vunpack.c.l.b16 %v1182
  %v1318 = vunpack.c.l.b16 %v1183
  %v1319 = vunpack.c.l.b16 %v1184
  %v1320 = vunpack.c.l.b16 %v1185
  %v1321 = vunpack.c.l.b16 %v1186
  %v1322 = vunpack.c.l.b16 %v1187
  %v1323 = vunpack.c.l.b16 %v1188
  %v1324 = vunpack.c.l.b16 %v1189
  %v1325 = vunpack.c.l.b16 %v1190
  %v1326 = vunpack.c.l.b16 %v1191
  %v1327 = vunpack.c.l.b16 %v1192
  %v1328 = vunpack.c.l.b16 %v1193
  %v1329 = vunpack.c.l.b16 %v1194
  %v1330 = vunpack.c.l.b16 %v1195
  %v1331 = vunpack.c.l.b16 %v1196
  %v1332 = vunpack.c.l.b16 %v1197
  %v1333 = vunpack.c.l.b16 %v1198
  %v1334 = vunpack.c.l.b16 %v1199
  %v1335 = vunpack.c.l.b16 %v1200
  %v1336 = vunpack.c.l.b16 %v1201
  %v1337 = vunpack.c.l.b16 %v1202
  %v1338 = vunpack.c.l.b16 %v1203
  %v1339 = vunpack.c.l.b16 %v1204
  %v1340 = vunpack.c.l.b16 %v1205
  %v1341 = vunpack.c.l.b16 %v1206
  %v1342 = vunpack.c.l.b16 %v1207
  %v1343 = vunpack.c.l.b16 %v1208
  %v1344 = vunpack.c.l.b16 %v1209
  %v1345 = vunpack.c.l.b16 %v1210
  %v1346 = vunpack.c.l.b16 %v1211
  %v1347 = vunpack.c.l.b16 %v1212
  %v1348 = vunpack.c.l.b16 %v1213
  %v1349 = vunpack.c.l.b16 %v1214
  %v1350 = vunpack.c.l.b16 %v1215
  %v1351 = vunpack.c.l.b16 %v1216
  %v1352 = vunpack.c.l.b16 %v1217
  %v1353 = vunpack.c.l.b16 %v1218
  %v1354 = vunpack.c.l.b16 %v1219
  %v1355 = vunpack.c.l.b16 %v1220
  %v1356 = vunpack.c.l.b16 %v1221
  %v1357 = vunpack.c.l.b16 %v1222
  %v1358 = vunpack.c.l.b16 %v1223
  %v1359 = vunpack.c.l.b16 %v1224
  %v1360 = vunpack.c.l.b16 %v1225
  %v1361 = vunpack.c.l.b16 %v1226
  %v1362 = vunpack.c.l.b16 %v1227
  %v1363 = vunpack.c.l.b16 %v1228
  %v1364 = vunpack.c.l.b16 %v1229
  %v1365 = vpack.c.b16 %v1302, %v1301
  %v1366 = vpack.c.b16 %v1304, %v1303
  %v1367 = vpack.c.b16 %v1306, %v1305
  %v1368 = vpack.c.b16 %v1308, %v1307
  %v1369 = vpack.c.b16 %v1310, %v1309
  %v1370 = vpack.c.b16 %v1312, %v1311
  %v1371 = vpack.c.b16 %v1314, %v1313
  %v1372 = vpack.c.b16 %v1316, %v1315
  %v1373 = vpack.c.b16 %v1318, %v1317
  %v1374 = vpack.c.b16 %v1320, %v1319
  %v1375 = vpack.c.b16 %v1322, %v1321
  %v1376 = vpack.c.b16 %v1324, %v1323
  %v1377 = vpack.c.b16 %v1326, %v1325
  %v1378 = vpack.c.b16 %v1328, %v1327
  %v1379 = vpack.c.b16 %v1330, %v1329
  %v1380 = vpack.c.b16 %v1332, %v1331
  %v1381 = vpack.c.b16 %v1334, %v1333
  %v1382 = vpack.c.b16 %v1336, %v1335
  %v1383 = vpack.c.b16 %v1338, %v1337
  %v1384 = vpack.c.b16 %v1340, %v1339
  %v1385 = vpack.c.b16 %v1342, %v1341
  %v1386 = vpack.c.b16 %v1344, %v1343
  %v1387 = vpack.c.b16 %v1346, %v1345
  %v1388 = vpack.c.b16 %v1348, %v1347
  %v1389 = vpack.c.b16 %v1350, %v1349
  %v1390 = vpack.c.b16 %v1352, %v1351
  %v1391 = vpack.c.b16 %v1354, %v1353
  %v1392 = vpack.c.b16 %v1356, %v1355
  %v1393 = vpack.c.b16 %v1358, %v1357
  %v1394 = vpack.c.b16 %v1360, %v1359
  %v1395 = vpack.c.b16 %v1362, %v1361
  %v1396 = vpack.c.b16 %v1364, %v1363
  %1429 = vmatprep.subr.bf16.mxu0 0
  %1430 = vmatpush1.bf16.msra.mxu0 %v1372
  %1431 = vmatprep.subr.bf16.mxu0 0
  %1432 = vmatpush1.bf16.msra.mxu0 %v1371
  %1433 = vmatprep.subr.bf16.mxu0 0
  %1434 = vmatpush1.bf16.msra.mxu0 %v1370
  %1435 = vmatprep.subr.bf16.mxu0 0
  %1436 = vmatpush1.bf16.msra.mxu0 %v1369
  %1437 = vmatprep.subr.bf16.mxu0 0
  %1438 = vmatpush1.bf16.msra.mxu0 %v1368
  %1439 = vmatprep.subr.bf16.mxu0 0
  %1440 = vmatpush1.bf16.msra.mxu0 %v1367
  %1441 = vmatprep.subr.bf16.mxu0 0
  %1442 = vmatpush1.bf16.msra.mxu0 %v1366
  %1443 = vmatprep.subr.bf16.mxu0 0
  %1444 = vmatpush1.bf16.msra.mxu0 %v1365
  %1445 = vmatprep.subr.bf16.mxu0 0
  %1446 = vmatpush2.bf16.msra.mxu0 %v1380
  %1447 = vmatprep.subr.bf16.mxu0 0
  %1448 = vmatpush2.bf16.msra.mxu0 %v1379
  %1449 = vmatprep.subr.bf16.mxu0 0
  %1450 = vmatpush2.bf16.msra.mxu0 %v1378
  %1451 = vmatprep.subr.bf16.mxu0 0
  %1452 = vmatpush2.bf16.msra.mxu0 %v1377
  %1453 = vmatprep.subr.bf16.mxu0 0
  %1454 = vmatpush2.bf16.msra.mxu0 %v1376
  %1455 = vmatprep.subr.bf16.mxu0 0
  %1456 = vmatpush2.bf16.msra.mxu0 %v1375
  %1457 = vmatprep.subr.bf16.mxu0 0
  %1458 = vmatpush2.bf16.msra.mxu0 %v1374
  %1459 = vmatprep.subr.bf16.mxu0 0
  %1460 = vmatpush2.bf16.msra.mxu0 %v1373
  %1461 = vmatprep.mubr.bf16.mxu0 %v1164
  %1462 = vmatmul.mubr.bf16.gmra.mxu0 %v1163
  %v1463 = vpop.f32.mrf.mxu0
  %v1464 = vadd.f32 %v1235, %v1463
  %v1465 = vpop.f32.mrf.mxu0
  %v1466 = vpop.f32.mrf.mxu0
  %v1467 = vpop.f32.mrf.mxu0
  %1468 = vdwg.mxu0
  %1469 = vmatprep.subr.bf16.mxu0 0
  %1470 = vmatpush1.bf16.msra.mxu0 %v1388
  %1471 = vmatprep.subr.bf16.mxu0 0
  %1472 = vmatpush1.bf16.msra.mxu0 %v1387
  %1473 = vmatprep.subr.bf16.mxu0 0
  %1474 = vmatpush1.bf16.msra.mxu0 %v1386
  %1475 = vmatprep.subr.bf16.mxu0 0
  %1476 = vmatpush1.bf16.msra.mxu0 %v1385
  %1477 = vmatprep.subr.bf16.mxu0 0
  %1478 = vmatpush1.bf16.msra.mxu0 %v1384
  %1479 = vmatprep.subr.bf16.mxu0 0
  %1480 = vmatpush1.bf16.msra.mxu0 %v1383
  %1481 = vmatprep.subr.bf16.mxu0 0
  %1482 = vmatpush1.bf16.msra.mxu0 %v1382
  %1483 = vmatprep.subr.bf16.mxu0 0
  %1484 = vmatpush1.bf16.msra.mxu0 %v1381
  %1485 = vmatprep.subr.bf16.mxu0 0
  %1486 = vmatpush2.bf16.msra.mxu0 %v1396
  %1487 = vmatprep.subr.bf16.mxu0 0
  %1488 = vmatpush2.bf16.msra.mxu0 %v1395
  %1489 = vmatprep.subr.bf16.mxu0 0
  %1490 = vmatpush2.bf16.msra.mxu0 %v1394
  %1491 = vmatprep.subr.bf16.mxu0 0
  %1492 = vmatpush2.bf16.msra.mxu0 %v1393
  %1493 = vmatprep.subr.bf16.mxu0 0
  %1494 = vmatpush2.bf16.msra.mxu0 %v1392
  %1495 = vmatprep.subr.bf16.mxu0 0
  %1496 = vmatpush2.bf16.msra.mxu0 %v1391
  %1497 = vmatprep.subr.bf16.mxu0 0
  %1498 = vmatpush2.bf16.msra.mxu0 %v1390
  %1499 = vmatprep.subr.bf16.mxu0 0
  %1500 = vmatpush2.bf16.msra.mxu0 %v1389
  %1501 = vmatprep.mubr.bf16.mxu0 %v1163
  %1502 = vmatmul.mubr.bf16.gmra.mxu0 %v1165
  %v1503 = vpop.f32.mrf.mxu0
  %v1504 = vadd.f32 %v1464, %v1503
  %v1505 = vpop.f32.mrf.mxu0
  %v1506 = vpop.f32.mrf.mxu0
  %v1507 = vpop.f32.mrf.mxu0
  %1508 = vdwg.mxu0
  %vm1509 = vcmp.ge.f32.partialorder %v1504, 0.0
  %v1510 = vmul.f32 %v1504, 0.2
  %v1511 = vsel %vm1509, %v1504, %v1510
  %v1512 = vpack.c.bf16 %v1511, %v1511
  %v1513 = vld [vmem:[%s9] sm:$0xf]
  %v1514 = vld [vmem:[%s9 + $0x4] sm:$0xf]
  %v1515 = vld [vmem:[%s9 + $0x8] sm:$0xf]
  %v1516 = vld [vmem:[%s9 + $0xc] sm:$0xf]
  %v1517 = vld [vmem:[%s9 + $0x10] sm:$0xf]
  %v1518 = vld [vmem:[%s9 + $0x14] sm:$0xf]
  %v1519 = vld [vmem:[%s9 + $0x18] sm:$0xf]
  %v1520 = vld [vmem:[%s9 + $0x1c] sm:$0xf]
  %v1521 = vld [vmem:[%s9 + $0x20] sm:$0xf]
  %v1522 = vld [vmem:[%s9 + $0x24] sm:$0xf]
  %v1523 = vld [vmem:[%s9 + $0x28] sm:$0xf]
  %v1524 = vld [vmem:[%s9 + $0x2c] sm:$0xf]
  %v1525 = vld [vmem:[%s9 + $0x30] sm:$0xf]
  %v1526 = vld [vmem:[%s9 + $0x34] sm:$0xf]
  %v1527 = vld [vmem:[%s9 + $0x38] sm:$0xf]
  %v1528 = vld [vmem:[%s9 + $0x3c] sm:$0xf]
  %v1529 = vld [vmem:[%s10] sm:$0x1]
  %v1531 = vlaneseq
  %v1532 = vshrl.u32 %v1531, 7
  %v1533 = vsub.s32 0, %v1532
  %v1534 = vrot.slane %v1529, %v1533
  %v1552 = vunpack.c.l.b16 %v1513
  %v1553 = vunpack.c.l.b16 %v1514
  %v1554 = vunpack.c.l.b16 %v1515
  %v1555 = vunpack.c.l.b16 %v1516
  %v1556 = vunpack.c.l.b16 %v1517
  %v1557 = vunpack.c.l.b16 %v1518
  %v1558 = vunpack.c.l.b16 %v1519
  %v1559 = vunpack.c.l.b16 %v1520
  %v1560 = vunpack.c.l.b16 %v1521
  %v1561 = vunpack.c.l.b16 %v1522
  %v1562 = vunpack.c.l.b16 %v1523
  %v1563 = vunpack.c.l.b16 %v1524
  %v1564 = vunpack.c.l.b16 %v1525
  %v1565 = vunpack.c.l.b16 %v1526
  %v1566 = vunpack.c.l.b16 %v1527
  %v1567 = vunpack.c.l.b16 %v1528
  %v1568 = vpack.c.b16 %v1553, %v1552
  %v1569 = vpack.c.b16 %v1555, %v1554
  %v1570 = vpack.c.b16 %v1557, %v1556
  %v1571 = vpack.c.b16 %v1559, %v1558
  %v1572 = vpack.c.b16 %v1561, %v1560
  %v1573 = vpack.c.b16 %v1563, %v1562
  %v1574 = vpack.c.b16 %v1565, %v1564
  %v1575 = vpack.c.b16 %v1567, %v1566
  %1584 = vmatprep.subr.bf16.mxu0 0
  %1585 = vmatpush1.bf16.msra.mxu0 %v1575
  %1586 = vmatprep.subr.bf16.mxu0 0
  %1587 = vmatpush1.bf16.msra.mxu0 %v1574
  %1588 = vmatprep.subr.bf16.mxu0 0
  %1589 = vmatpush1.bf16.msra.mxu0 %v1573
  %1590 = vmatprep.subr.bf16.mxu0 0
  %1591 = vmatpush1.bf16.msra.mxu0 %v1572
  %1592 = vmatprep.subr.bf16.mxu0 0
  %1593 = vmatpush1.bf16.msra.mxu0 %v1571
  %1594 = vmatprep.subr.bf16.mxu0 0
  %1595 = vmatpush1.bf16.msra.mxu0 %v1570
  %1596 = vmatprep.subr.bf16.mxu0 0
  %1597 = vmatpush1.bf16.msra.mxu0 %v1569
  %1598 = vmatprep.subr.bf16.mxu0 0
  %1599 = vmatpush1.bf16.msra.mxu0 %v1568
  %1600 = vmatprep.subr.bf16.mxu0 0
  %1601 = vmatpush2.bf16.msra.mxu0 0
  %1602 = vmatprep.subr.bf16.mxu0 0
  %1603 = vmatpush2.bf16.msra.mxu0 0
  %1604 = vmatprep.subr.bf16.mxu0 0
  %1605 = vmatpush2.bf16.msra.mxu0 0
  %1606 = vmatprep.subr.bf16.mxu0 0
  %1607 = vmatpush2.bf16.msra.mxu0 0
  %1608 = vmatprep.subr.bf16.mxu0 0
  %1609 = vmatpush2.bf16.msra.mxu0 0
  %1610 = vmatprep.subr.bf16.mxu0 0
  %1611 = vmatpush2.bf16.msra.mxu0 0
  %1612 = vmatprep.subr.bf16.mxu0 0
  %1613 = vmatpush2.bf16.msra.mxu0 0
  %1614 = vmatprep.subr.bf16.mxu0 0
  %1615 = vmatpush2.bf16.msra.mxu0 0
  %1616 = vmatprep.mubr.bf16.mxu0 0
  %1617 = vmatmul.mubr.bf16.gmra.mxu0 %v1512
  %v1618 = vpop.f32.mrf.mxu0
  %v1619 = vadd.f32 %v1534, %v1618
  %v1620 = vpop.f32.mrf.mxu0
  %v1621 = vpop.f32.mrf.mxu0
  %v1622 = vpop.f32.mrf.mxu0
  %1623 = vdwg.mxu0
  %v1624 = vmax.f32 %v1619, 0.0
  %v1625 = vld [vmem:[%s11] sm:$0x1]
  %v1627 = vlaneseq
  %v1628 = vshrl.u32 %v1627, 7
  %v1629 = vsub.s32 0, %v1628
  %v1630 = vrot.slane %v1625, %v1629
  %v1632 = vmul.f32 %v1624, %v1630
  %vm1633 = vcmask 517120
  %v1634 = vsel %vm1633, %v1632, 0.0
  %1635 = vadd.xlane.f32.xlu0 %v1634
  %v1636 = vpop.xlane.xlu0 %1635
  %v1637 = vld [vmem:[#allocation3] sm:$0x1]
  %v1639 = vlaneseq
  %v1640 = vshrl.u32 %v1639, 7
  %v1641 = vsub.s32 0, %v1640
  %v1642 = vrot.slane %v1637, %v1641
  %v1644 = vadd.f32 %v1636, %v1642
  %v1645 = vsub.f32 0.0, %v1644
  %v1646 = vmul.f32 %v1645, 1.442695
  %v1647 = vpow.pop %v1646
  %v1648 = vadd.f32 %v1647, 1.0
  %v1649 = vrcp.pop %v1648
  %v1650 = vmul.f32 1.0, %v1649
  %vm1651 = vcmask 1024
  %1652 = vst.msk [vmem:[%s13] sm:$0x3] %vm1651, %v1650
  // Predicated region
  $region54: #{cross_evaluator_forward.1} parent=0 // pred_check
    _
  $region55: #{cross_evaluator_forward.1} parent=0 // pred_check_branch
    %1654 = sbr.rel (0) target = $region57
  $region56: #{cross_evaluator_forward.1} parent=0 // pred_region
    _
  $region57: #{cross_evaluator_forward.1} parent=0 // pred_fallthru
    _
  // Predicated region
  $region58: #{cross_evaluator_forward.1} parent=0 // pred_check
    _
  $region59: #{cross_evaluator_forward.1} parent=0 // pred_check_branch
    %1656 = sbr.rel (0) target = $region61
  $region60: #{cross_evaluator_forward.1} parent=0 // pred_region
    _
  $region61: #{cross_evaluator_forward.1} parent=0 // pred_fallthru
    _

</llo_original>
